<compile_context>
chip_gen: v7x
topology: tpu7x:2x2x1
jax: 0.10.0
libtpu: 0.0.40
codegen_flags: <defaults>
</compile_context>

<pallas_src>
import jax
import jax.numpy as jnp
from jax.experimental import pallas as pl
from jax.experimental.pallas import tpu as pltpu


def _round_up(v, m):
    return ((v + m - 1) // m) * m


def _contig_runs(dst):
    """Group consecutive (src, dst) pairs (dst increments by 1) into static
    (dst_start, src_start, length) runs."""
    runs = []
    start = 0
    for i in range(1, len(dst) + 1):
        if i == len(dst) or dst[i] != dst[i - 1] + 1:
            runs.append((dst[start], start, i - start))
            start = i
    return runs


def _make_gsconv_kernel(C1, c_, H, W, pad, runs_x1, runs_dw):
    S = H * W

    def kernel(x_ref, w1_ref, b1_ref, w2_ref, b2_ref, o_ref, xp_ref):
        # ---- cv1: 1x1 conv (BN scale pre-folded into w1) + shift + SiLU ----
        x = x_ref[0]                                              # (C1, S)
        y1 = jnp.dot(w1_ref[...], x, preferred_element_type=jnp.float32)
        y1 = y1 + b1_ref[...]
        x1 = y1 * jax.nn.sigmoid(y1)                              # (c_, S) f32

        # ---- cv2: depthwise 5x5 (pad=2) on flattened spatial ---------------
        # Stage x1 into a zero-padded flat scratch; the flat zero halo handles
        # row (H) boundaries, an iota column mask handles W wrap-around.
        xp_ref[:, 0:pad] = jnp.zeros((c_, pad), jnp.float32)
        xp_ref[:, pad + S:pad + S + pad] = jnp.zeros((c_, pad), jnp.float32)
        xp_ref[:, pad:pad + S] = x1

        col = jax.lax.broadcasted_iota(jnp.int32, (1, S), 1) % W
        acc = jnp.zeros((c_, S), jnp.float32)
        for dw in range(-2, 3):
            m = ((col + dw >= 0) & (col + dw < W)).astype(jnp.float32)   # (1, S)
            for dh in range(-2, 3):
                off = pad + dh * W + dw
                kk = (dh + 2) * 5 + (dw + 2)
                acc = acc + xp_ref[:, off:off + S] * m * w2_ref[:, kk:kk + 1]
        y2 = acc + b2_ref[...]
        x2 = y2 * jax.nn.sigmoid(y2)                              # (c_, S) f32

        # ---- concat + channel shuffle: static contiguous channel stores ----
        for dst, src, ln in runs_x1:
            o_ref[0, dst:dst + ln, :] = x1[src:src + ln].astype(o_ref.dtype)
        for dst, src, ln in runs_dw:
            o_ref[0, dst:dst + ln, :] = x2[src:src + ln].astype(o_ref.dtype)

    return kernel


def gsconv_forward(x, w_cv1, bn1, w_cv2, bn2, eps=1e-5):
    """Fused GSConv forward (inference BN), k=1, s=1, g=1, act=SiLU.

    x:      (N, C1, H, W) float32 NCHW
    w_cv1:  (c_, C1, 1, 1) pointwise conv weight (bias=False)
    w_cv2:  (c_, 1, 5, 5)  depthwise conv weight (groups=c_, bias=False)
    bn1/bn2: (gamma, beta, running_mean, running_var), each shape (c_,)
    returns (N, 2*c_, H, W) NCHW
    """
    N, C1, H, W = map(int, x.shape)
    c_ = int(w_cv1.shape[0])
    C2 = 2 * c_
    S = H * W
    dtype = jnp.float32  # bf16 I/O would halve HBM traffic if the model dtype allows

    # ---- host-side constant folds (weights/BN are constants) -------------------
    # Permute computed channels: evens first, then odds. With this permutation both
    # the pass-through (cv1) channels and the depthwise (cv2) channels land in
    # contiguous shuffled-output ranges -> shuffle becomes static addressing.
    perm = list(range(0, c_, 2)) + list(range(1, c_, 2))
    perm_a = jnp.array(perm)

    g1, be1, m1, v1 = bn1
    s1 = g1 / jnp.sqrt(v1 + eps)
    sh1 = be1 - m1 * s1
    w1p = (w_cv1[:, :, 0, 0] * s1[:, None])[perm_a].astype(dtype)           # (c_, C1)
    b1p = sh1[perm_a].reshape(c_, 1).astype(dtype)

    g2, be2, m2, v2 = bn2
    s2 = g2 / jnp.sqrt(v2 + eps)
    sh2 = be2 - m2 * s2
    w2p = (w_cv2[:, 0].reshape(c_, 25) * s2[:, None])[perm_a].astype(dtype)  # (c_, 25)
    b2p = sh2[perm_a].reshape(c_, 1).astype(dtype)

    # shuffled output-channel position of x2 channel c (out[:c_]=x2[0::2], rest odd)
    def q(c):
        return c // 2 if c % 2 == 0 else c_ + c // 2

    runs_x1 = _contig_runs([q(p) for p in perm])          # cv1 channels (copied through)
    runs_dw = _contig_runs([q(c_ + p) for p in perm])     # cv2 channels

    pad = _round_up(2 * W + 2, 128)   # flat-spatial halo, lane-aligned stage offset

    x3 = x.reshape(N, C1, S).astype(dtype)                # free view of NCHW

    kernel = _make_gsconv_kernel(C1, c_, H, W, pad, runs_x1, runs_dw)

    # Explicit VMEM budget (double-buffered in/out blocks + scratch + headroom);
    # keeps large real-model shapes inside v7x's 64 MiB while staying generous.
    need = 4 * (2 * C1 * S + 2 * C2 * S + c_ * (S + 2 * pad) + 4 * c_ * S
                + c_ * C1 + 25 * c_ + 2 * c_)
    vmem_limit = int(min(48 * 2**20, max(4 * need, 8 * 2**20)))

    out3 = pl.pallas_call(
        kernel,
        out_shape=jax.ShapeDtypeStruct((N, C2, S), dtype),
        grid_spec=pltpu.PrefetchScalarGridSpec(
            num_scalar_prefetch=0,
            grid=(N,),
            in_specs=[
                pl.BlockSpec((1, C1, S), lambda n: (n, 0, 0)),
                pl.BlockSpec((c_, C1), lambda n: (0, 0)),
                pl.BlockSpec((c_, 1), lambda n: (0, 0)),
                pl.BlockSpec((c_, 25), lambda n: (0, 0)),
                pl.BlockSpec((c_, 1), lambda n: (0, 0)),
            ],
            out_specs=pl.BlockSpec((1, C2, S), lambda n: (n, 0, 0)),
            scratch_shapes=[pltpu.VMEM((c_, S + 2 * pad), jnp.float32)],
        ),
        compiler_params=pltpu.CompilerParams(
            dimension_semantics=("parallel",),
            vmem_limit_bytes=vmem_limit,
        ),
    )(x3, w1p, b1p, w2p, b2p)

    return out3.reshape(N, C2, H, W)                      # free view back to NCHW


def reference_gsconv(x, w_cv1, bn1, w_cv2, bn2, eps=1e-5):
    """Pure-JAX reference mirroring the PyTorch GSConv forward (inference BN)."""
    def conv_bn_silu(inp, w, bn, padding, groups):
        g, b, m, v = bn
        y = jax.lax.conv_general_dilated(
            inp, w, window_strides=(1, 1), padding=padding,
            dimension_numbers=("NCHW", "OIHW", "NCHW"),
            feature_group_count=groups)
        s = (g / jnp.sqrt(v + eps)).reshape(1, -1, 1, 1)
        sh = (b - m * g / jnp.sqrt(v + eps)).reshape(1, -1, 1, 1)
        y = y * s + sh
        return y * jax.nn.sigmoid(y)

    x1 = conv_bn_silu(x, w_cv1, bn1, "VALID", 1)
    c_ = x1.shape[1]
    x2b = conv_bn_silu(x1, w_cv2, bn2, ((2, 2), (2, 2)), c_)
    x2 = jnp.concatenate([x1, x2b], axis=1)
    b, n, h, w = x2.shape
    y = x2.reshape(b * n // 2, 2, h * w)
    y = jnp.transpose(y, (1, 0, 2))
    y = y.reshape(2, -1, n // 2, h, w)
    return jnp.concatenate([y[0], y[1]], axis=1)


if __name__ == "__main__":
    key = jax.random.PRNGKey(0)
    k1, k2, k3, k4, k5, k6, k7, k8 = jax.random.split(key, 8)

    N, C1, H, W = 2, 4, 16, 16
    C2 = 8
    c_ = C2 // 2

    x = jax.random.normal(k1, (N, C1, H, W), dtype=jnp.float32)
    w_cv1 = jax.random.normal(k2, (c_, C1, 1, 1), dtype=jnp.float32) * 0.3
    w_cv2 = jax.random.normal(k3, (c_, 1, 5, 5), dtype=jnp.float32) * 0.2

    bn1 = (1.0 + 0.1 * jax.random.normal(k4, (c_,), dtype=jnp.float32),
           0.1 * jax.random.normal(k5, (c_,), dtype=jnp.float32),
           0.05 * jax.random.normal(k6, (c_,), dtype=jnp.float32),
           0.5 + jax.random.uniform(k7, (c_,), dtype=jnp.float32))
    bn2 = (1.0 + 0.1 * jax.random.normal(k8, (c_,), dtype=jnp.float32),
           jnp.full((c_,), 0.05, jnp.float32),
           jnp.zeros((c_,), jnp.float32),
           jnp.full((c_,), 0.8, jnp.float32))

    out = gsconv_forward(x, w_cv1, bn1, w_cv2, bn2)
    out = jax.block_until_ready(out)

    ref = reference_gsconv(x, w_cv1, bn1, w_cv2, bn2)
    assert out.shape == (N, C2, H, W), out.shape
    max_err = float(jnp.max(jnp.abs(out - ref)))
    assert jnp.allclose(out, ref, atol=2e-4, rtol=2e-4), max_err

    print("KERNEL_OK")
</pallas_src>

<mosaic_0001>
module attributes {stable_mosaic.version = 11 : i64} {
  func.func @kernel(%arg0: i32, %arg1: memref<1x4x256xf32, #tpu.memory_space<vmem>>, %arg2: memref<4x4xf32, #tpu.memory_space<vmem>>, %arg3: memref<4x1xf32, #tpu.memory_space<vmem>>, %arg4: memref<4x25xf32, #tpu.memory_space<vmem>>, %arg5: memref<4x1xf32, #tpu.memory_space<vmem>>, %arg6: memref<1x8x256xf32, #tpu.memory_space<vmem>>, %arg7: memref<4x512xf32, #tpu.memory_space<vmem>>) attributes {dimension_semantics = [#tpu.dimension_semantics<parallel>], iteration_bounds = array<i64: 2>, scalar_prefetch = 0 : i64, scratch_operands = 1 : i64, tpu.core_type = #tpu.core_type<tc>, window_params = [{transform_indices = @transform_0, window_bounds = array<i64: 1, 4, 256>}, {pipeline_mode = #tpu.pipeline_mode<synchronous>, transform_indices = @transform_1, window_bounds = array<i64: 4, 4>}, {pipeline_mode = #tpu.pipeline_mode<synchronous>, transform_indices = @transform_2, window_bounds = array<i64: 4, 1>}, {pipeline_mode = #tpu.pipeline_mode<synchronous>, transform_indices = @transform_3, window_bounds = array<i64: 4, 25>}, {pipeline_mode = #tpu.pipeline_mode<synchronous>, transform_indices = @transform_4, window_bounds = array<i64: 4, 1>}, {transform_indices = @transform_5, window_bounds = array<i64: 1, 8, 256>}]} {
    %c0 = arith.constant 0 : index
    %c0_0 = arith.constant 0 : index
    %c0_1 = arith.constant 0 : index
    %0 = vector.load %arg1[%c0, %c0_0, %c0_1] : memref<1x4x256xf32, #tpu.memory_space<vmem>>, vector<1x4x256xf32>
    %1 = vector.shape_cast %0 : vector<1x4x256xf32> to vector<4x256xf32>
    %c0_2 = arith.constant 0 : index
    %c0_3 = arith.constant 0 : index
    %2 = vector.load %arg2[%c0_2, %c0_3] : memref<4x4xf32, #tpu.memory_space<vmem>>, vector<4x4xf32>
    %cst = arith.constant dense<0.000000e+00> : vector<4x256xf32>
    %3 = tpu.matmul %2, %1, %cst {dimension_numbers = #tpu.dot_dimension_numbers<[1], [0], [0], [1], [0, 0, 1, 1], [], []>} : vector<4x4xf32>, vector<4x256xf32>, vector<4x256xf32> -> vector<4x256xf32>
    %c0_4 = arith.constant 0 : index
    %c0_5 = arith.constant 0 : index
    %4 = vector.load %arg3[%c0_4, %c0_5] : memref<4x1xf32, #tpu.memory_space<vmem>>, vector<4x1xf32>
    %5 = vector.broadcast %4 : vector<4x1xf32> to vector<4x256xf32>
    %6 = arith.addf %3, %5 : vector<4x256xf32>
    %7 = arith.negf %6 : vector<4x256xf32>
    %8 = math.exp %7 : vector<4x256xf32>
    %cst_6 = arith.constant 1.000000e+00 : f32
    %9 = vector.broadcast %cst_6 : f32 to vector<4x256xf32>
    %10 = arith.addf %9, %8 : vector<4x256xf32>
    %11 = arith.divf %9, %10 : vector<4x256xf32>
    %12 = arith.mulf %6, %11 : vector<4x256xf32>
    %cst_7 = arith.constant 0.000000e+00 : f32
    %13 = vector.broadcast %cst_7 : f32 to vector<4x128xf32>
    %c0_8 = arith.constant 0 : index
    %c0_9 = arith.constant 0 : index
    %14 = vector.load %arg7[%c0_8, %c0_9] : memref<4x512xf32, #tpu.memory_space<vmem>>, vector<4x128xf32>
    tpu.vector_store %arg7[%c0_8, %c0_9], %13 {strides = array<i32>} : memref<4x512xf32, #tpu.memory_space<vmem>>, vector<4x128xf32>,
    %cst_10 = arith.constant 0.000000e+00 : f32
    %15 = vector.broadcast %cst_10 : f32 to vector<4x128xf32>
    %c0_11 = arith.constant 0 : index
    %c384 = arith.constant 384 : index
    %16 = vector.load %arg7[%c0_11, %c384] : memref<4x512xf32, #tpu.memory_space<vmem>>, vector<4x128xf32>
    tpu.vector_store %arg7[%c0_11, %c384], %15 {strides = array<i32>} : memref<4x512xf32, #tpu.memory_space<vmem>>, vector<4x128xf32>,
    %c0_12 = arith.constant 0 : index
    %c128 = arith.constant 128 : index
    %17 = vector.load %arg7[%c0_12, %c128] : memref<4x512xf32, #tpu.memory_space<vmem>>, vector<4x256xf32>
    tpu.vector_store %arg7[%c0_12, %c128], %12 {strides = array<i32>} : memref<4x512xf32, #tpu.memory_space<vmem>>, vector<4x256xf32>,
    %18 = tpu.iota {dimensions = array<i32: 1>} : vector<1x256xi32>
    %c16_i32 = arith.constant 16 : i32
    %c0_i32 = arith.constant 0 : i32
    %19 = arith.cmpi eq, %c16_i32, %c0_i32 : i32
    %c1_i32 = arith.constant 1 : i32
    %20 = arith.select %19, %c1_i32, %c16_i32 : i32
    %21 = vector.broadcast %20 : i32 to vector<1x256xi32>
    %22 = arith.remsi %18, %21 : vector<1x256xi32>
    %c0_i32_13 = arith.constant 0 : i32
    %23 = vector.broadcast %c0_i32_13 : i32 to vector<1x256xi32>
    %24 = arith.cmpi ne, %22, %23 : vector<1x256xi32>
    %c0_i32_14 = arith.constant 0 : i32
    %25 = vector.broadcast %c0_i32_14 : i32 to vector<1x256xi32>
    %26 = arith.cmpi slt, %22, %25 : vector<1x256xi32>
    %c0_i32_15 = arith.constant 0 : i32
    %27 = arith.cmpi slt, %20, %c0_i32_15 : i32
    %28 = vector.broadcast %27 : i1 to vector<1x256xi1>
    %29 = vector.broadcast %28 : vector<1x256xi1> to vector<1x256xi1>
    %30 = arith.xori %26, %29 : vector<1x256xi1>
    %31 = arith.andi %30, %24 : vector<1x256xi1>
    %32 = vector.broadcast %20 : i32 to vector<1x256xi32>
    %33 = arith.addi %22, %32 : vector<1x256xi32>
    %34 = arith.select %31, %33, %22 : vector<1x256xi1>, vector<1x256xi32>
    %cst_16 = arith.constant 0.000000e+00 : f32
    %35 = vector.broadcast %cst_16 : f32 to vector<4x256xf32>
    %c-2_i32 = arith.constant -2 : i32
    %36 = vector.broadcast %c-2_i32 : i32 to vector<1x256xi32>
    %37 = arith.addi %34, %36 : vector<1x256xi32>
    %c0_i32_17 = arith.constant 0 : i32
    %38 = vector.broadcast %c0_i32_17 : i32 to vector<1x256xi32>
    %39 = arith.cmpi sge, %37, %38 : vector<1x256xi32>
    %c-2_i32_18 = arith.constant -2 : i32
    %40 = vector.broadcast %c-2_i32_18 : i32 to vector<1x256xi32>
    %41 = arith.addi %34, %40 : vector<1x256xi32>
    %c16_i32_19 = arith.constant 16 : i32
    %42 = vector.broadcast %c16_i32_19 : i32 to vector<1x256xi32>
    %43 = arith.cmpi slt, %41, %42 : vector<1x256xi32>
    %44 = arith.andi %39, %43 : vector<1x256xi1>
    %45 = arith.extui %44 : vector<1x256xi1> to vector<1x256xi32>
    %46 = arith.sitofp %45 : vector<1x256xi32> to vector<1x256xf32>
    %c0_20 = arith.constant 0 : index
    %c94 = arith.constant 94 : index
    %47 = vector.load %arg7[%c0_20, %c94] : memref<4x512xf32, #tpu.memory_space<vmem>>, vector<4x256xf32>
    %48 = vector.broadcast %46 : vector<1x256xf32> to vector<4x256xf32>
    %49 = arith.mulf %47, %48 : vector<4x256xf32>
    %c0_21 = arith.constant 0 : index
    %c0_22 = arith.constant 0 : index
    %50 = vector.load %arg4[%c0_21, %c0_22] : memref<4x25xf32, #tpu.memory_space<vmem>>, vector<4x1xf32>
    %51 = vector.broadcast %50 : vector<4x1xf32> to vector<4x256xf32>
    %52 = arith.mulf %49, %51 : vector<4x256xf32>
    %53 = arith.addf %35, %52 : vector<4x256xf32>
    %c0_23 = arith.constant 0 : index
    %c110 = arith.constant 110 : index
    %54 = vector.load %arg7[%c0_23, %c110] : memref<4x512xf32, #tpu.memory_space<vmem>>, vector<4x256xf32>
    %55 = vector.broadcast %46 : vector<1x256xf32> to vector<4x256xf32>
    %56 = arith.mulf %54, %55 : vector<4x256xf32>
    %c0_24 = arith.constant 0 : index
    %c5 = arith.constant 5 : index
    %57 = vector.load %arg4[%c0_24, %c5] : memref<4x25xf32, #tpu.memory_space<vmem>>, vector<4x1xf32>
    %58 = vector.broadcast %57 : vector<4x1xf32> to vector<4x256xf32>
    %59 = arith.mulf %56, %58 : vector<4x256xf32>
    %60 = arith.addf %53, %59 : vector<4x256xf32>
    %c0_25 = arith.constant 0 : index
    %c126 = arith.constant 126 : index
    %61 = vector.load %arg7[%c0_25, %c126] : memref<4x512xf32, #tpu.memory_space<vmem>>, vector<4x256xf32>
    %62 = vector.broadcast %46 : vector<1x256xf32> to vector<4x256xf32>
    %63 = arith.mulf %61, %62 : vector<4x256xf32>
    %c0_26 = arith.constant 0 : index
    %c10 = arith.constant 10 : index
    %64 = vector.load %arg4[%c0_26, %c10] : memref<4x25xf32, #tpu.memory_space<vmem>>, vector<4x1xf32>
    %65 = vector.broadcast %64 : vector<4x1xf32> to vector<4x256xf32>
    %66 = arith.mulf %63, %65 : vector<4x256xf32>
    %67 = arith.addf %60, %66 : vector<4x256xf32>
    %c0_27 = arith.constant 0 : index
    %c142 = arith.constant 142 : index
    %68 = vector.load %arg7[%c0_27, %c142] : memref<4x512xf32, #tpu.memory_space<vmem>>, vector<4x256xf32>
    %69 = vector.broadcast %46 : vector<1x256xf32> to vector<4x256xf32>
    %70 = arith.mulf %68, %69 : vector<4x256xf32>
    %c0_28 = arith.constant 0 : index
    %c15 = arith.constant 15 : index
    %71 = vector.load %arg4[%c0_28, %c15] : memref<4x25xf32, #tpu.memory_space<vmem>>, vector<4x1xf32>
    %72 = vector.broadcast %71 : vector<4x1xf32> to vector<4x256xf32>
    %73 = arith.mulf %70, %72 : vector<4x256xf32>
    %74 = arith.addf %67, %73 : vector<4x256xf32>
    %c0_29 = arith.constant 0 : index
    %c158 = arith.constant 158 : index
    %75 = vector.load %arg7[%c0_29, %c158] : memref<4x512xf32, #tpu.memory_space<vmem>>, vector<4x256xf32>
    %76 = vector.broadcast %46 : vector<1x256xf32> to vector<4x256xf32>
    %77 = arith.mulf %75, %76 : vector<4x256xf32>
    %c0_30 = arith.constant 0 : index
    %c20 = arith.constant 20 : index
    %78 = vector.load %arg4[%c0_30, %c20] : memref<4x25xf32, #tpu.memory_space<vmem>>, vector<4x1xf32>
    %79 = vector.broadcast %78 : vector<4x1xf32> to vector<4x256xf32>
    %80 = arith.mulf %77, %79 : vector<4x256xf32>
    %81 = arith.addf %74, %80 : vector<4x256xf32>
    %c-1_i32 = arith.constant -1 : i32
    %82 = vector.broadcast %c-1_i32 : i32 to vector<1x256xi32>
    %83 = arith.addi %34, %82 : vector<1x256xi32>
    %c0_i32_31 = arith.constant 0 : i32
    %84 = vector.broadcast %c0_i32_31 : i32 to vector<1x256xi32>
    %85 = arith.cmpi sge, %83, %84 : vector<1x256xi32>
    %c-1_i32_32 = arith.constant -1 : i32
    %86 = vector.broadcast %c-1_i32_32 : i32 to vector<1x256xi32>
    %87 = arith.addi %34, %86 : vector<1x256xi32>
    %c16_i32_33 = arith.constant 16 : i32
    %88 = vector.broadcast %c16_i32_33 : i32 to vector<1x256xi32>
    %89 = arith.cmpi slt, %87, %88 : vector<1x256xi32>
    %90 = arith.andi %85, %89 : vector<1x256xi1>
    %91 = arith.extui %90 : vector<1x256xi1> to vector<1x256xi32>
    %92 = arith.sitofp %91 : vector<1x256xi32> to vector<1x256xf32>
    %c0_34 = arith.constant 0 : index
    %c95 = arith.constant 95 : index
    %93 = vector.load %arg7[%c0_34, %c95] : memref<4x512xf32, #tpu.memory_space<vmem>>, vector<4x256xf32>
    %94 = vector.broadcast %92 : vector<1x256xf32> to vector<4x256xf32>
    %95 = arith.mulf %93, %94 : vector<4x256xf32>
    %c0_35 = arith.constant 0 : index
    %c1 = arith.constant 1 : index
    %96 = vector.load %arg4[%c0_35, %c1] : memref<4x25xf32, #tpu.memory_space<vmem>>, vector<4x1xf32>
    %97 = vector.broadcast %96 : vector<4x1xf32> to vector<4x256xf32>
    %98 = arith.mulf %95, %97 : vector<4x256xf32>
    %99 = arith.addf %81, %98 : vector<4x256xf32>
    %c0_36 = arith.constant 0 : index
    %c111 = arith.constant 111 : index
    %100 = vector.load %arg7[%c0_36, %c111] : memref<4x512xf32, #tpu.memory_space<vmem>>, vector<4x256xf32>
    %101 = vector.broadcast %92 : vector<1x256xf32> to vector<4x256xf32>
    %102 = arith.mulf %100, %101 : vector<4x256xf32>
    %c0_37 = arith.constant 0 : index
    %c6 = arith.constant 6 : index
    %103 = vector.load %arg4[%c0_37, %c6] : memref<4x25xf32, #tpu.memory_space<vmem>>, vector<4x1xf32>
    %104 = vector.broadcast %103 : vector<4x1xf32> to vector<4x256xf32>
    %105 = arith.mulf %102, %104 : vector<4x256xf32>
    %106 = arith.addf %99, %105 : vector<4x256xf32>
    %c0_38 = arith.constant 0 : index
    %c127 = arith.constant 127 : index
    %107 = vector.load %arg7[%c0_38, %c127] : memref<4x512xf32, #tpu.memory_space<vmem>>, vector<4x256xf32>
    %108 = vector.broadcast %92 : vector<1x256xf32> to vector<4x256xf32>
    %109 = arith.mulf %107, %108 : vector<4x256xf32>
    %c0_39 = arith.constant 0 : index
    %c11 = arith.constant 11 : index
    %110 = vector.load %arg4[%c0_39, %c11] : memref<4x25xf32, #tpu.memory_space<vmem>>, vector<4x1xf32>
    %111 = vector.broadcast %110 : vector<4x1xf32> to vector<4x256xf32>
    %112 = arith.mulf %109, %111 : vector<4x256xf32>
    %113 = arith.addf %106, %112 : vector<4x256xf32>
    %c0_40 = arith.constant 0 : index
    %c143 = arith.constant 143 : index
    %114 = vector.load %arg7[%c0_40, %c143] : memref<4x512xf32, #tpu.memory_space<vmem>>, vector<4x256xf32>
    %115 = vector.broadcast %92 : vector<1x256xf32> to vector<4x256xf32>
    %116 = arith.mulf %114, %115 : vector<4x256xf32>
    %c0_41 = arith.constant 0 : index
    %c16 = arith.constant 16 : index
    %117 = vector.load %arg4[%c0_41, %c16] : memref<4x25xf32, #tpu.memory_space<vmem>>, vector<4x1xf32>
    %118 = vector.broadcast %117 : vector<4x1xf32> to vector<4x256xf32>
    %119 = arith.mulf %116, %118 : vector<4x256xf32>
    %120 = arith.addf %113, %119 : vector<4x256xf32>
    %c0_42 = arith.constant 0 : index
    %c159 = arith.constant 159 : index
    %121 = vector.load %arg7[%c0_42, %c159] : memref<4x512xf32, #tpu.memory_space<vmem>>, vector<4x256xf32>
    %122 = vector.broadcast %92 : vector<1x256xf32> to vector<4x256xf32>
    %123 = arith.mulf %121, %122 : vector<4x256xf32>
    %c0_43 = arith.constant 0 : index
    %c21 = arith.constant 21 : index
    %124 = vector.load %arg4[%c0_43, %c21] : memref<4x25xf32, #tpu.memory_space<vmem>>, vector<4x1xf32>
    %125 = vector.broadcast %124 : vector<4x1xf32> to vector<4x256xf32>
    %126 = arith.mulf %123, %125 : vector<4x256xf32>
    %127 = arith.addf %120, %126 : vector<4x256xf32>
    %c0_i32_44 = arith.constant 0 : i32
    %128 = vector.broadcast %c0_i32_44 : i32 to vector<1x256xi32>
    %129 = arith.addi %34, %128 : vector<1x256xi32>
    %c0_i32_45 = arith.constant 0 : i32
    %130 = vector.broadcast %c0_i32_45 : i32 to vector<1x256xi32>
    %131 = arith.cmpi sge, %129, %130 : vector<1x256xi32>
    %c0_i32_46 = arith.constant 0 : i32
    %132 = vector.broadcast %c0_i32_46 : i32 to vector<1x256xi32>
    %133 = arith.addi %34, %132 : vector<1x256xi32>
    %c16_i32_47 = arith.constant 16 : i32
    %134 = vector.broadcast %c16_i32_47 : i32 to vector<1x256xi32>
    %135 = arith.cmpi slt, %133, %134 : vector<1x256xi32>
    %136 = arith.andi %131, %135 : vector<1x256xi1>
    %137 = arith.extui %136 : vector<1x256xi1> to vector<1x256xi32>
    %138 = arith.sitofp %137 : vector<1x256xi32> to vector<1x256xf32>
    %c0_48 = arith.constant 0 : index
    %c96 = arith.constant 96 : index
    %139 = vector.load %arg7[%c0_48, %c96] : memref<4x512xf32, #tpu.memory_space<vmem>>, vector<4x256xf32>
    %140 = vector.broadcast %138 : vector<1x256xf32> to vector<4x256xf32>
    %141 = arith.mulf %139, %140 : vector<4x256xf32>
    %c0_49 = arith.constant 0 : index
    %c2 = arith.constant 2 : index
    %142 = vector.load %arg4[%c0_49, %c2] : memref<4x25xf32, #tpu.memory_space<vmem>>, vector<4x1xf32>
    %143 = vector.broadcast %142 : vector<4x1xf32> to vector<4x256xf32>
    %144 = arith.mulf %141, %143 : vector<4x256xf32>
    %145 = arith.addf %127, %144 : vector<4x256xf32>
    %c0_50 = arith.constant 0 : index
    %c112 = arith.constant 112 : index
    %146 = vector.load %arg7[%c0_50, %c112] : memref<4x512xf32, #tpu.memory_space<vmem>>, vector<4x256xf32>
    %147 = vector.broadcast %138 : vector<1x256xf32> to vector<4x256xf32>
    %148 = arith.mulf %146, %147 : vector<4x256xf32>
    %c0_51 = arith.constant 0 : index
    %c7 = arith.constant 7 : index
    %149 = vector.load %arg4[%c0_51, %c7] : memref<4x25xf32, #tpu.memory_space<vmem>>, vector<4x1xf32>
    %150 = vector.broadcast %149 : vector<4x1xf32> to vector<4x256xf32>
    %151 = arith.mulf %148, %150 : vector<4x256xf32>
    %152 = arith.addf %145, %151 : vector<4x256xf32>
    %c0_52 = arith.constant 0 : index
    %c128_53 = arith.constant 128 : index
    %153 = vector.load %arg7[%c0_52, %c128_53] : memref<4x512xf32, #tpu.memory_space<vmem>>, vector<4x256xf32>
    %154 = vector.broadcast %138 : vector<1x256xf32> to vector<4x256xf32>
    %155 = arith.mulf %153, %154 : vector<4x256xf32>
    %c0_54 = arith.constant 0 : index
    %c12 = arith.constant 12 : index
    %156 = vector.load %arg4[%c0_54, %c12] : memref<4x25xf32, #tpu.memory_space<vmem>>, vector<4x1xf32>
    %157 = vector.broadcast %156 : vector<4x1xf32> to vector<4x256xf32>
    %158 = arith.mulf %155, %157 : vector<4x256xf32>
    %159 = arith.addf %152, %158 : vector<4x256xf32>
    %c0_55 = arith.constant 0 : index
    %c144 = arith.constant 144 : index
    %160 = vector.load %arg7[%c0_55, %c144] : memref<4x512xf32, #tpu.memory_space<vmem>>, vector<4x256xf32>
    %161 = vector.broadcast %138 : vector<1x256xf32> to vector<4x256xf32>
    %162 = arith.mulf %160, %161 : vector<4x256xf32>
    %c0_56 = arith.constant 0 : index
    %c17 = arith.constant 17 : index
    %163 = vector.load %arg4[%c0_56, %c17] : memref<4x25xf32, #tpu.memory_space<vmem>>, vector<4x1xf32>
    %164 = vector.broadcast %163 : vector<4x1xf32> to vector<4x256xf32>
    %165 = arith.mulf %162, %164 : vector<4x256xf32>
    %166 = arith.addf %159, %165 : vector<4x256xf32>
    %c0_57 = arith.constant 0 : index
    %c160 = arith.constant 160 : index
    %167 = vector.load %arg7[%c0_57, %c160] : memref<4x512xf32, #tpu.memory_space<vmem>>, vector<4x256xf32>
    %168 = vector.broadcast %138 : vector<1x256xf32> to vector<4x256xf32>
    %169 = arith.mulf %167, %168 : vector<4x256xf32>
    %c0_58 = arith.constant 0 : index
    %c22 = arith.constant 22 : index
    %170 = vector.load %arg4[%c0_58, %c22] : memref<4x25xf32, #tpu.memory_space<vmem>>, vector<4x1xf32>
    %171 = vector.broadcast %170 : vector<4x1xf32> to vector<4x256xf32>
    %172 = arith.mulf %169, %171 : vector<4x256xf32>
    %173 = arith.addf %166, %172 : vector<4x256xf32>
    %c1_i32_59 = arith.constant 1 : i32
    %174 = vector.broadcast %c1_i32_59 : i32 to vector<1x256xi32>
    %175 = arith.addi %34, %174 : vector<1x256xi32>
    %c0_i32_60 = arith.constant 0 : i32
    %176 = vector.broadcast %c0_i32_60 : i32 to vector<1x256xi32>
    %177 = arith.cmpi sge, %175, %176 : vector<1x256xi32>
    %c1_i32_61 = arith.constant 1 : i32
    %178 = vector.broadcast %c1_i32_61 : i32 to vector<1x256xi32>
    %179 = arith.addi %34, %178 : vector<1x256xi32>
    %c16_i32_62 = arith.constant 16 : i32
    %180 = vector.broadcast %c16_i32_62 : i32 to vector<1x256xi32>
    %181 = arith.cmpi slt, %179, %180 : vector<1x256xi32>
    %182 = arith.andi %177, %181 : vector<1x256xi1>
    %183 = arith.extui %182 : vector<1x256xi1> to vector<1x256xi32>
    %184 = arith.sitofp %183 : vector<1x256xi32> to vector<1x256xf32>
    %c0_63 = arith.constant 0 : index
    %c97 = arith.constant 97 : index
    %185 = vector.load %arg7[%c0_63, %c97] : memref<4x512xf32, #tpu.memory_space<vmem>>, vector<4x256xf32>
    %186 = vector.broadcast %184 : vector<1x256xf32> to vector<4x256xf32>
    %187 = arith.mulf %185, %186 : vector<4x256xf32>
    %c0_64 = arith.constant 0 : index
    %c3 = arith.constant 3 : index
    %188 = vector.load %arg4[%c0_64, %c3] : memref<4x25xf32, #tpu.memory_space<vmem>>, vector<4x1xf32>
    %189 = vector.broadcast %188 : vector<4x1xf32> to vector<4x256xf32>
    %190 = arith.mulf %187, %189 : vector<4x256xf32>
    %191 = arith.addf %173, %190 : vector<4x256xf32>
    %c0_65 = arith.constant 0 : index
    %c113 = arith.constant 113 : index
    %192 = vector.load %arg7[%c0_65, %c113] : memref<4x512xf32, #tpu.memory_space<vmem>>, vector<4x256xf32>
    %193 = vector.broadcast %184 : vector<1x256xf32> to vector<4x256xf32>
    %194 = arith.mulf %192, %193 : vector<4x256xf32>
    %c0_66 = arith.constant 0 : index
    %c8 = arith.constant 8 : index
    %195 = vector.load %arg4[%c0_66, %c8] : memref<4x25xf32, #tpu.memory_space<vmem>>, vector<4x1xf32>
    %196 = vector.broadcast %195 : vector<4x1xf32> to vector<4x256xf32>
    %197 = arith.mulf %194, %196 : vector<4x256xf32>
    %198 = arith.addf %191, %197 : vector<4x256xf32>
    %c0_67 = arith.constant 0 : index
    %c129 = arith.constant 129 : index
    %199 = vector.load %arg7[%c0_67, %c129] : memref<4x512xf32, #tpu.memory_space<vmem>>, vector<4x256xf32>
    %200 = vector.broadcast %184 : vector<1x256xf32> to vector<4x256xf32>
    %201 = arith.mulf %199, %200 : vector<4x256xf32>
    %c0_68 = arith.constant 0 : index
    %c13 = arith.constant 13 : index
    %202 = vector.load %arg4[%c0_68, %c13] : memref<4x25xf32, #tpu.memory_space<vmem>>, vector<4x1xf32>
    %203 = vector.broadcast %202 : vector<4x1xf32> to vector<4x256xf32>
    %204 = arith.mulf %201, %203 : vector<4x256xf32>
    %205 = arith.addf %198, %204 : vector<4x256xf32>
    %c0_69 = arith.constant 0 : index
    %c145 = arith.constant 145 : index
    %206 = vector.load %arg7[%c0_69, %c145] : memref<4x512xf32, #tpu.memory_space<vmem>>, vector<4x256xf32>
    %207 = vector.broadcast %184 : vector<1x256xf32> to vector<4x256xf32>
    %208 = arith.mulf %206, %207 : vector<4x256xf32>
    %c0_70 = arith.constant 0 : index
    %c18 = arith.constant 18 : index
    %209 = vector.load %arg4[%c0_70, %c18] : memref<4x25xf32, #tpu.memory_space<vmem>>, vector<4x1xf32>
    %210 = vector.broadcast %209 : vector<4x1xf32> to vector<4x256xf32>
    %211 = arith.mulf %208, %210 : vector<4x256xf32>
    %212 = arith.addf %205, %211 : vector<4x256xf32>
    %c0_71 = arith.constant 0 : index
    %c161 = arith.constant 161 : index
    %213 = vector.load %arg7[%c0_71, %c161] : memref<4x512xf32, #tpu.memory_space<vmem>>, vector<4x256xf32>
    %214 = vector.broadcast %184 : vector<1x256xf32> to vector<4x256xf32>
    %215 = arith.mulf %213, %214 : vector<4x256xf32>
    %c0_72 = arith.constant 0 : index
    %c23 = arith.constant 23 : index
    %216 = vector.load %arg4[%c0_72, %c23] : memref<4x25xf32, #tpu.memory_space<vmem>>, vector<4x1xf32>
    %217 = vector.broadcast %216 : vector<4x1xf32> to vector<4x256xf32>
    %218 = arith.mulf %215, %217 : vector<4x256xf32>
    %219 = arith.addf %212, %218 : vector<4x256xf32>
    %c2_i32 = arith.constant 2 : i32
    %220 = vector.broadcast %c2_i32 : i32 to vector<1x256xi32>
    %221 = arith.addi %34, %220 : vector<1x256xi32>
    %c0_i32_73 = arith.constant 0 : i32
    %222 = vector.broadcast %c0_i32_73 : i32 to vector<1x256xi32>
    %223 = arith.cmpi sge, %221, %222 : vector<1x256xi32>
    %c2_i32_74 = arith.constant 2 : i32
    %224 = vector.broadcast %c2_i32_74 : i32 to vector<1x256xi32>
    %225 = arith.addi %34, %224 : vector<1x256xi32>
    %c16_i32_75 = arith.constant 16 : i32
    %226 = vector.broadcast %c16_i32_75 : i32 to vector<1x256xi32>
    %227 = arith.cmpi slt, %225, %226 : vector<1x256xi32>
    %228 = arith.andi %223, %227 : vector<1x256xi1>
    %229 = arith.extui %228 : vector<1x256xi1> to vector<1x256xi32>
    %230 = arith.sitofp %229 : vector<1x256xi32> to vector<1x256xf32>
    %c0_76 = arith.constant 0 : index
    %c98 = arith.constant 98 : index
    %231 = vector.load %arg7[%c0_76, %c98] : memref<4x512xf32, #tpu.memory_space<vmem>>, vector<4x256xf32>
    %232 = vector.broadcast %230 : vector<1x256xf32> to vector<4x256xf32>
    %233 = arith.mulf %231, %232 : vector<4x256xf32>
    %c0_77 = arith.constant 0 : index
    %c4 = arith.constant 4 : index
    %234 = vector.load %arg4[%c0_77, %c4] : memref<4x25xf32, #tpu.memory_space<vmem>>, vector<4x1xf32>
    %235 = vector.broadcast %234 : vector<4x1xf32> to vector<4x256xf32>
    %236 = arith.mulf %233, %235 : vector<4x256xf32>
    %237 = arith.addf %219, %236 : vector<4x256xf32>
    %c0_78 = arith.constant 0 : index
    %c114 = arith.constant 114 : index
    %238 = vector.load %arg7[%c0_78, %c114] : memref<4x512xf32, #tpu.memory_space<vmem>>, vector<4x256xf32>
    %239 = vector.broadcast %230 : vector<1x256xf32> to vector<4x256xf32>
    %240 = arith.mulf %238, %239 : vector<4x256xf32>
    %c0_79 = arith.constant 0 : index
    %c9 = arith.constant 9 : index
    %241 = vector.load %arg4[%c0_79, %c9] : memref<4x25xf32, #tpu.memory_space<vmem>>, vector<4x1xf32>
    %242 = vector.broadcast %241 : vector<4x1xf32> to vector<4x256xf32>
    %243 = arith.mulf %240, %242 : vector<4x256xf32>
    %244 = arith.addf %237, %243 : vector<4x256xf32>
    %c0_80 = arith.constant 0 : index
    %c130 = arith.constant 130 : index
    %245 = vector.load %arg7[%c0_80, %c130] : memref<4x512xf32, #tpu.memory_space<vmem>>, vector<4x256xf32>
    %246 = vector.broadcast %230 : vector<1x256xf32> to vector<4x256xf32>
    %247 = arith.mulf %245, %246 : vector<4x256xf32>
    %c0_81 = arith.constant 0 : index
    %c14 = arith.constant 14 : index
    %248 = vector.load %arg4[%c0_81, %c14] : memref<4x25xf32, #tpu.memory_space<vmem>>, vector<4x1xf32>
    %249 = vector.broadcast %248 : vector<4x1xf32> to vector<4x256xf32>
    %250 = arith.mulf %247, %249 : vector<4x256xf32>
    %251 = arith.addf %244, %250 : vector<4x256xf32>
    %c0_82 = arith.constant 0 : index
    %c146 = arith.constant 146 : index
    %252 = vector.load %arg7[%c0_82, %c146] : memref<4x512xf32, #tpu.memory_space<vmem>>, vector<4x256xf32>
    %253 = vector.broadcast %230 : vector<1x256xf32> to vector<4x256xf32>
    %254 = arith.mulf %252, %253 : vector<4x256xf32>
    %c0_83 = arith.constant 0 : index
    %c19 = arith.constant 19 : index
    %255 = vector.load %arg4[%c0_83, %c19] : memref<4x25xf32, #tpu.memory_space<vmem>>, vector<4x1xf32>
    %256 = vector.broadcast %255 : vector<4x1xf32> to vector<4x256xf32>
    %257 = arith.mulf %254, %256 : vector<4x256xf32>
    %258 = arith.addf %251, %257 : vector<4x256xf32>
    %c0_84 = arith.constant 0 : index
    %c162 = arith.constant 162 : index
    %259 = vector.load %arg7[%c0_84, %c162] : memref<4x512xf32, #tpu.memory_space<vmem>>, vector<4x256xf32>
    %260 = vector.broadcast %230 : vector<1x256xf32> to vector<4x256xf32>
    %261 = arith.mulf %259, %260 : vector<4x256xf32>
    %c0_85 = arith.constant 0 : index
    %c24 = arith.constant 24 : index
    %262 = vector.load %arg4[%c0_85, %c24] : memref<4x25xf32, #tpu.memory_space<vmem>>, vector<4x1xf32>
    %263 = vector.broadcast %262 : vector<4x1xf32> to vector<4x256xf32>
    %264 = arith.mulf %261, %263 : vector<4x256xf32>
    %265 = arith.addf %258, %264 : vector<4x256xf32>
    %c0_86 = arith.constant 0 : index
    %c0_87 = arith.constant 0 : index
    %266 = vector.load %arg5[%c0_86, %c0_87] : memref<4x1xf32, #tpu.memory_space<vmem>>, vector<4x1xf32>
    %267 = vector.broadcast %266 : vector<4x1xf32> to vector<4x256xf32>
    %268 = arith.addf %265, %267 : vector<4x256xf32>
    %269 = arith.negf %268 : vector<4x256xf32>
    %270 = math.exp %269 : vector<4x256xf32>
    %cst_88 = arith.constant 1.000000e+00 : f32
    %271 = vector.broadcast %cst_88 : f32 to vector<4x256xf32>
    %272 = arith.addf %271, %270 : vector<4x256xf32>
    %273 = arith.divf %271, %272 : vector<4x256xf32>
    %274 = arith.mulf %268, %273 : vector<4x256xf32>
    %275 = vector.extract_strided_slice %12 {offsets = [0, 0], sizes = [2, 256], strides = [1, 1]} : vector<4x256xf32> to vector<2x256xf32>
    %c0_89 = arith.constant 0 : index
    %c0_90 = arith.constant 0 : index
    %c0_91 = arith.constant 0 : index
    %276 = vector.load %arg6[%c0_89, %c0_90, %c0_91] : memref<1x8x256xf32, #tpu.memory_space<vmem>>, vector<1x2x256xf32>
    %277 = vector.shape_cast %276 : vector<1x2x256xf32> to vector<2x256xf32>
    %278 = vector.shape_cast %275 : vector<2x256xf32> to vector<1x2x256xf32>
    tpu.vector_store %arg6[%c0_89, %c0_90, %c0_91], %278 {strides = array<i32>} : memref<1x8x256xf32, #tpu.memory_space<vmem>>, vector<1x2x256xf32>,
    %279 = vector.extract_strided_slice %12 {offsets = [2, 0], sizes = [2, 256], strides = [1, 1]} : vector<4x256xf32> to vector<2x256xf32>
    %c0_92 = arith.constant 0 : index
    %c4_93 = arith.constant 4 : index
    %c0_94 = arith.constant 0 : index
    %280 = vector.load %arg6[%c0_92, %c4_93, %c0_94] : memref<1x8x256xf32, #tpu.memory_space<vmem>>, vector<1x2x256xf32>
    %281 = vector.shape_cast %280 : vector<1x2x256xf32> to vector<2x256xf32>
    %282 = vector.shape_cast %279 : vector<2x256xf32> to vector<1x2x256xf32>
    tpu.vector_store %arg6[%c0_92, %c4_93, %c0_94], %282 {strides = array<i32>} : memref<1x8x256xf32, #tpu.memory_space<vmem>>, vector<1x2x256xf32>,
    %283 = vector.extract_strided_slice %274 {offsets = [0, 0], sizes = [2, 256], strides = [1, 1]} : vector<4x256xf32> to vector<2x256xf32>
    %c0_95 = arith.constant 0 : index
    %c2_96 = arith.constant 2 : index
    %c0_97 = arith.constant 0 : index
    %284 = vector.load %arg6[%c0_95, %c2_96, %c0_97] : memref<1x8x256xf32, #tpu.memory_space<vmem>>, vector<1x2x256xf32>
    %285 = vector.shape_cast %284 : vector<1x2x256xf32> to vector<2x256xf32>
    %286 = vector.shape_cast %283 : vector<2x256xf32> to vector<1x2x256xf32>
    tpu.vector_store %arg6[%c0_95, %c2_96, %c0_97], %286 {strides = array<i32>} : memref<1x8x256xf32, #tpu.memory_space<vmem>>, vector<1x2x256xf32>,
    %287 = vector.extract_strided_slice %274 {offsets = [2, 0], sizes = [2, 256], strides = [1, 1]} : vector<4x256xf32> to vector<2x256xf32>
    %c0_98 = arith.constant 0 : index
    %c6_99 = arith.constant 6 : index
    %c0_100 = arith.constant 0 : index
    %288 = vector.load %arg6[%c0_98, %c6_99, %c0_100] : memref<1x8x256xf32, #tpu.memory_space<vmem>>, vector<1x2x256xf32>
    %289 = vector.shape_cast %288 : vector<1x2x256xf32> to vector<2x256xf32>
    %290 = vector.shape_cast %287 : vector<2x256xf32> to vector<1x2x256xf32>
    tpu.vector_store %arg6[%c0_98, %c6_99, %c0_100], %290 {strides = array<i32>} : memref<1x8x256xf32, #tpu.memory_space<vmem>>, vector<1x2x256xf32>,
    return
  }
  func.func @transform_0(%arg0: i32) -> (i32, i32, i32) {
    %c0_i32 = arith.constant 0 : i32
    %c0_i32_0 = arith.constant 0 : i32
    %c0_i32_1 = arith.constant 0 : i32
    return %arg0, %c0_i32, %c0_i32_0 : i32, i32, i32
  }
  func.func @transform_1(%arg0: i32) -> (i32, i32) {
    %c0_i32 = arith.constant 0 : i32
    %c0_i32_0 = arith.constant 0 : i32
    %c0_i32_1 = arith.constant 0 : i32
    return %c0_i32, %c0_i32_0 : i32, i32
  }
  func.func @transform_2(%arg0: i32) -> (i32, i32) {
    %c0_i32 = arith.constant 0 : i32
    %c0_i32_0 = arith.constant 0 : i32
    %c0_i32_1 = arith.constant 0 : i32
    return %c0_i32, %c0_i32_0 : i32, i32
  }
  func.func @transform_3(%arg0: i32) -> (i32, i32) {
    %c0_i32 = arith.constant 0 : i32
    %c0_i32_0 = arith.constant 0 : i32
    %c0_i32_1 = arith.constant 0 : i32
    return %c0_i32, %c0_i32_0 : i32, i32
  }
  func.func @transform_4(%arg0: i32) -> (i32, i32) {
    %c0_i32 = arith.constant 0 : i32
    %c0_i32_0 = arith.constant 0 : i32
    %c0_i32_1 = arith.constant 0 : i32
    return %c0_i32, %c0_i32_0 : i32, i32
  }
  func.func @transform_5(%arg0: i32) -> (i32, i32, i32) {
    %c0_i32 = arith.constant 0 : i32
    %c0_i32_0 = arith.constant 0 : i32
    %c0_i32_1 = arith.constant 0 : i32
    return %arg0, %c0_i32, %c0_i32_0 : i32, i32, i32
  }
}

</mosaic_0001>

<llo_original>
// kernel: tpu_custom_call.1
$region0: #{tpu_custom_call.1}
  #allocation0 [shape = 'u32[]', space=smem, size = 0x4, offset = 0x4, fixed_abs, tag = 'smem constant byte address 0x4 - core index']
  #allocation1 [shape = 'u32[144,128]{1,0:T(1,128)}', space=vmem, size = 0x12000, scoped, tag = 'internal scratch']
  #allocation2 [shape = 'f32[4,512]{1,0:T(4,128)}', space=vmem, size = 0x2000, scoped, tag = 'scratch operand']
  %s0 = inlined_call_operand.hbm [shape: f32[2,4,256], index: 0, kind: input, shape index: {}]
  %s1 = inlined_call_operand.vmem [shape: f32[4,4], index: 1, kind: input, shape index: {}]
  %s2 = inlined_call_operand.vmem [shape: f32[4,1], index: 2, kind: input, shape index: {}]
  %s3 = inlined_call_operand.vmem [shape: f32[4,25], index: 3, kind: input, shape index: {}]
  %s4 = inlined_call_operand.vmem [shape: f32[4,1], index: 4, kind: input, shape index: {}]
  %s5 = inlined_call_operand.hbm [shape: f32[2,8,256], index: 5, kind: output, shape index: {}]
  %s6 = sld [smem:[#allocation0]]
  $region57: #{tpu_custom_call.1} parent=0
    _
  %s8 = ssub.s32 1, %s6
  %s9 = scalar_select 0, %s8, %s6
  $region1: #{tpu_custom_call.1} parent=0
    #allocation3 [shape = 'u8[8192]{0}', space=vmem, size = 0x2000, scoped, tag = 'input window, operand 0']
    #allocation4 [shape = 's32[2]{0}', space=sflag, size = 0x8, scoped, tag = 'scoped memory for tpu_custom_call.1']
    #allocation5 [shape = 's32[2]{0}', space=sflag, size = 0x8, scoped, tag = 'scoped memory for tpu_custom_call.1']
    #allocation6 [shape = 'u8[16384]{0}', space=vmem, size = 0x4000, scoped, tag = 'output window, operand 0']
    %10 = vsyncpa [#allocation4], 0
    %s11 = scalar_lea.sflag [#allocation4], 1
    %12 = vsyncpa %s11, 0
    %13 = vsyncpa [#allocation5], 0
    %s14 = scalar_lea.sflag [#allocation5], 1
    %15 = vsyncpa %s14, 0
    loop: start=0, step=1, limit=4
    $region2: #{tpu_custom_call.1} parent=1 // loop_pre_header
      _
    $region3: #{tpu_custom_call.1} parent=1 // loop_header
      %s17 = sphi 0, %s21
      %p18 = scmp.ge.s32.totalorder %s17, 4
      %s27 = sphi 0, %s29
      %s30 = sphi 0, %s27
      %s31 = sphi 0, %s30
      %s47 = sphi 0, %s31
      %s51 = sphi 0, %s51
      %s53 = sphi 0, %s51
      %s54 = sphi 0, %s53
      %s68 = sphi 0, %s54
      %s72 = sphi 0, %s72
      %s74 = sphi 0, %s72
      %s75 = sphi 0, %s74
      %s89 = sphi 0, %s75
      %s93 = sphi 0, %s93
      %s95 = sphi 0, %s93
      %s96 = sphi 0, %s95
      %s110 = sphi 0, %s96
      %s114 = sphi 0, %s114
      %s116 = sphi 0, %s114
      %s117 = sphi 0, %s116
      %s131 = sphi 0, %s117
      %s137 = sphi 0, %s139
      %s140 = sphi 0, %s137
      %s141 = sphi 0, %s140
      %s157 = sphi 0, %s141
    $region4: #{tpu_custom_call.1} parent=1 // loop_header_branch
      %20 = sbr.rel (%p18) target = $region8
    $region5: #{tpu_custom_call.1} parent=1 // loop_body
      %s22 = ssub.s32 %s17, 1
      %s23 = ssub.s32 %s17, 2
      %s24 = sadd.s32 %s17, 1
      %s25 = ssub.s32 %s17, %s24
      %p26 = scmp.eq.s32.totalorder %s25, 0
      %s28 = sadd.s32 %s27, 1
      %s29 = scalar_select %p26, %s27, %s28
      %p32 = pneg %p26
      %p33 = scmp.eq.s32.totalorder %s17, 1
      %p34 = por %p32, %p33
      %p35 = scmp.ne.s32.totalorder %s27, %s30
      %p36 = scmp.eq.s32.totalorder %s17, 0
      %p37 = por %p35, %p36
      %p38 = scmp.ne.s32.totalorder %s27, %s30
      %p39 = scmp.eq.s32.totalorder %s22, 1
      %p40 = por %p38, %p39
      %p41 = scmp.ne.s32.totalorder %s30, %s31
      %p42 = scmp.eq.s32.totalorder %s22, 0
      %p43 = por %p41, %p42
      %p44 = scmp.ne.s32.totalorder %s30, %s31
      %p45 = scmp.eq.s32.totalorder %s23, 1
      %p46 = por %p44, %p45
      %p48 = scmp.ne.s32.totalorder %s31, %s47
      %p49 = scmp.eq.s32.totalorder %s23, 0
      %p50 = por %p48, %p49
      %s52 = sadd.s32 %s51, 1
      %p55 = scmp.eq.s32.totalorder %s17, 1
      %p56 = scmp.ne.s32.totalorder %s51, %s53
      %p57 = scmp.eq.s32.totalorder %s17, 0
      %p58 = por %p56, %p57
      %p59 = scmp.ne.s32.totalorder %s51, %s53
      %p60 = scmp.eq.s32.totalorder %s22, 1
      %p61 = por %p59, %p60
      %p62 = scmp.ne.s32.totalorder %s53, %s54
      %p63 = scmp.eq.s32.totalorder %s22, 0
      %p64 = por %p62, %p63
      %p65 = scmp.ne.s32.totalorder %s53, %s54
      %p66 = scmp.eq.s32.totalorder %s23, 1
      %p67 = por %p65, %p66
      %p69 = scmp.ne.s32.totalorder %s54, %s68
      %p70 = scmp.eq.s32.totalorder %s23, 0
      %p71 = por %p69, %p70
      %s73 = sadd.s32 %s72, 1
      %p76 = scmp.eq.s32.totalorder %s17, 1
      %p77 = scmp.ne.s32.totalorder %s72, %s74
      %p78 = scmp.eq.s32.totalorder %s17, 0
      %p79 = por %p77, %p78
      %p80 = scmp.ne.s32.totalorder %s72, %s74
      %p81 = scmp.eq.s32.totalorder %s22, 1
      %p82 = por %p80, %p81
      %p83 = scmp.ne.s32.totalorder %s74, %s75
      %p84 = scmp.eq.s32.totalorder %s22, 0
      %p85 = por %p83, %p84
      %p86 = scmp.ne.s32.totalorder %s74, %s75
      %p87 = scmp.eq.s32.totalorder %s23, 1
      %p88 = por %p86, %p87
      %p90 = scmp.ne.s32.totalorder %s75, %s89
      %p91 = scmp.eq.s32.totalorder %s23, 0
      %p92 = por %p90, %p91
      %s94 = sadd.s32 %s93, 1
      %p97 = scmp.eq.s32.totalorder %s17, 1
      %p98 = scmp.ne.s32.totalorder %s93, %s95
      %p99 = scmp.eq.s32.totalorder %s17, 0
      %p100 = por %p98, %p99
      %p101 = scmp.ne.s32.totalorder %s93, %s95
      %p102 = scmp.eq.s32.totalorder %s22, 1
      %p103 = por %p101, %p102
      %p104 = scmp.ne.s32.totalorder %s95, %s96
      %p105 = scmp.eq.s32.totalorder %s22, 0
      %p106 = por %p104, %p105
      %p107 = scmp.ne.s32.totalorder %s95, %s96
      %p108 = scmp.eq.s32.totalorder %s23, 1
      %p109 = por %p107, %p108
      %p111 = scmp.ne.s32.totalorder %s96, %s110
      %p112 = scmp.eq.s32.totalorder %s23, 0
      %p113 = por %p111, %p112
      %s115 = sadd.s32 %s114, 1
      %p118 = scmp.eq.s32.totalorder %s17, 1
      %p119 = scmp.ne.s32.totalorder %s114, %s116
      %p120 = scmp.eq.s32.totalorder %s17, 0
      %p121 = por %p119, %p120
      %p122 = scmp.ne.s32.totalorder %s114, %s116
      %p123 = scmp.eq.s32.totalorder %s22, 1
      %p124 = por %p122, %p123
      %p125 = scmp.ne.s32.totalorder %s116, %s117
      %p126 = scmp.eq.s32.totalorder %s22, 0
      %p127 = por %p125, %p126
      %p128 = scmp.ne.s32.totalorder %s116, %s117
      %p129 = scmp.eq.s32.totalorder %s23, 1
      %p130 = por %p128, %p129
      %p132 = scmp.ne.s32.totalorder %s117, %s131
      %p133 = scmp.eq.s32.totalorder %s23, 0
      %p134 = por %p132, %p133
      %s135 = ssub.s32 %s17, %s24
      %p136 = scmp.eq.s32.totalorder %s135, 0
      %s138 = sadd.s32 %s137, 1
      %s139 = scalar_select %p136, %s137, %s138
      %p142 = pneg %p136
      %p143 = scmp.eq.s32.totalorder %s17, 1
      %p144 = por %p142, %p143
      %p145 = scmp.ne.s32.totalorder %s137, %s140
      %p146 = scmp.eq.s32.totalorder %s17, 0
      %p147 = por %p145, %p146
      %p148 = scmp.ne.s32.totalorder %s137, %s140
      %p149 = scmp.eq.s32.totalorder %s22, 1
      %p150 = por %p148, %p149
      %p151 = scmp.ne.s32.totalorder %s140, %s141
      %p152 = scmp.eq.s32.totalorder %s22, 0
      %p153 = por %p151, %p152
      %p154 = scmp.ne.s32.totalorder %s140, %s141
      %p155 = scmp.eq.s32.totalorder %s23, 1
      %p156 = por %p154, %p155
      %p158 = scmp.ne.s32.totalorder %s141, %s157
      %p159 = scmp.eq.s32.totalorder %s23, 0
      %p160 = por %p158, %p159
      %p161 = scmp.le.s32.totalorder 1, %s17
      %p162 = scmp.lt.s32.totalorder %s17, 3
      %p163 = pnand %p161, %p162
      %p164 = pneg %p163
      // Predicated region
      $region9: #{tpu_custom_call.1} parent=5 // pred_check
        _
      $region10: #{tpu_custom_call.1} parent=5 // pred_check_branch
        %166 = sbr.rel (%p163) target = $region12
      $region11: #{tpu_custom_call.1} parent=5 // pred_region
        %s167 = ssub.s32 %s17, 1
        // Predicated region
        $region13: #{tpu_custom_call.1} parent=11 // pred_check
          %p168 = pneg %p64
        $region14: #{tpu_custom_call.1} parent=11 // pred_check_branch
          %170 = sbr.rel (%p168) target = $region16
        $region15: #{tpu_custom_call.1} parent=11 // pred_region
          _
        $region16: #{tpu_custom_call.1} parent=11 // pred_fallthru
          _
        // Predicated region
        $region17: #{tpu_custom_call.1} parent=11 // pred_check
          %p171 = pneg %p85
        $region18: #{tpu_custom_call.1} parent=11 // pred_check_branch
          %173 = sbr.rel (%p171) target = $region20
        $region19: #{tpu_custom_call.1} parent=11 // pred_region
          _
        $region20: #{tpu_custom_call.1} parent=11 // pred_fallthru
          _
        // Predicated region
        $region21: #{tpu_custom_call.1} parent=11 // pred_check
          %p174 = pneg %p106
        $region22: #{tpu_custom_call.1} parent=11 // pred_check_branch
          %176 = sbr.rel (%p174) target = $region24
        $region23: #{tpu_custom_call.1} parent=11 // pred_region
          _
        $region24: #{tpu_custom_call.1} parent=11 // pred_fallthru
          _
        // Predicated region
        $region25: #{tpu_custom_call.1} parent=11 // pred_check
          %p177 = pneg %p127
        $region26: #{tpu_custom_call.1} parent=11 // pred_check_branch
          %179 = sbr.rel (%p177) target = $region28
        $region27: #{tpu_custom_call.1} parent=11 // pred_region
          _
        $region28: #{tpu_custom_call.1} parent=11 // pred_fallthru
          _
      $region12: #{tpu_custom_call.1} parent=5 // pred_fallthru
        _
      %p180 = scmp.lt.s32.totalorder %s17, 2
      // Predicated region
      $region29: #{tpu_custom_call.1} parent=5 // pred_check
        %p181 = pneg %p180
      $region30: #{tpu_custom_call.1} parent=5 // pred_check_branch
        %183 = sbr.rel (%p181) target = $region32
      $region31: #{tpu_custom_call.1} parent=5 // pred_region
        // Predicated region
        $region33: #{tpu_custom_call.1} parent=31 // pred_check
          %p184 = pneg %p37
        $region34: #{tpu_custom_call.1} parent=31 // pred_check_branch
          %186 = sbr.rel (%p184) target = $region36
        $region35: #{tpu_custom_call.1} parent=31 // pred_region
          %s187 = sand.u32 %s27, 1
          %s188 = scalar_lea.sflag [#allocation4], %s187
          %s189 = sand.u32 %s27, 1
          %s190 = smul.addr %s189, 8
          %s191 = scalar_lea.vmem [#allocation3], %s190
          %s193 = ssub.s32 128, 128
          %194 = vsyncadd %s188, %s193
          %s195 = smul.addr %s17, 2
          %s196 = smul.addr %s195, 64
          %s197 = scalar_lea.hbm %s0, %s196
          %s199 = sshll.u32 %s191, 4
          %s200 = int_to_ptr.vmem [resolvable:$true] %s199
          %202 = dma.hbm_to_vmem [thread:$0]  %s197, 128, %s200, %s188
        $region36: #{tpu_custom_call.1} parent=31 // pred_fallthru
          _
      $region32: #{tpu_custom_call.1} parent=5 // pred_fallthru
        _
      %p203 = scmp.le.s32.totalorder 1, %s17
      %p204 = scmp.lt.s32.totalorder %s17, 3
      %p205 = pnand %p203, %p204
      %p206 = pneg %p205
      // Predicated region
      $region37: #{tpu_custom_call.1} parent=5 // pred_check
        _
      $region38: #{tpu_custom_call.1} parent=5 // pred_check_branch
        %208 = sbr.rel (%p205) target = $region40
      $region39: #{tpu_custom_call.1} parent=5 // pred_region
        %s209 = ssub.s32 %s17, 1
        %s210 = sand.u32 %s30, 1
        %s211 = scalar_lea.sflag [#allocation4], %s210
        %s212 = sand.u32 %s30, 1
        %s213 = smul.addr %s212, 8
        %s214 = scalar_lea.vmem [#allocation3], %s213
        // Predicated region
        $region41: #{tpu_custom_call.1} parent=39 // pred_check
          %p215 = pneg %p43
        $region42: #{tpu_custom_call.1} parent=39 // pred_check_branch
          %217 = sbr.rel (%p215) target = $region44
        $region43: #{tpu_custom_call.1} parent=39 // pred_region
          %218 = dma.done %s211, 128
        $region44: #{tpu_custom_call.1} parent=39 // pred_fallthru
          _
        %s219 = sand.u32 %s30, 1
        %s220 = scalar_lea.sflag [#allocation4], %s219
        %s221 = sand.u32 %s30, 1
        %s222 = smul.addr %s221, 8
        %s223 = scalar_lea.vmem [#allocation3], %s222
        %p224 = pneg %p43
        %p225 = pneg %p40
        %p226 = pneg %p64
        %p227 = pneg %p61
        %p228 = pneg %p85
        %p229 = pneg %p82
        %p230 = pneg %p106
        %p231 = pneg %p103
        %p232 = pneg %p127
        %p233 = pneg %p124
        %p234 = pneg %p153
        %p235 = pneg %p150
        %s236 = sand.u32 %s140, 1
        %s237 = scalar_lea.sflag [#allocation5], %s236
        %s238 = sand.u32 %s140, 1
        %s239 = smul.addr %s238, 16
        %s240 = scalar_lea.vmem [#allocation6], %s239
        %v241 = vld [vmem:[%s214] sm:$0xff]
        %v242 = vld [vmem:[%s1] sm:$0xf]
        %v243 = vld [vmem:[%s2] sm:$0xf]
        %245 = vset.pattern.permute.xlu0 0
        %246 = vperm.xlu0 %245, %v243
        %v247 = vpop.permute.xlu0 %246
        %v250 = vcombine.high %v241, %v241
        %vm251 = vcmask 31744
        %v253 = vsel %vm251, %v242, 0
        %vm255 = vcmask 1043456
        %v256 = vsel %vm255, %v241, 0
        %v258 = vsel %vm255, %v250, 0
        %260 = vmatprep.subr.mxu0 %v258
        %261 = vmatpush1.msra.mxu0 %v256
        %262 = vmatprep.subr.mxu0 0.0
        %263 = vmatpush1.msra.mxu0 0.0
        %264 = vmatprep.subr.mxu0 0.0
        %265 = vmatpush1.msra.mxu0 0.0
        %266 = vmatprep.subr.mxu0 0.0
        %267 = vmatpush1.msra.mxu0 0.0
        %268 = vmatprep.subr.mxu0 0.0
        %269 = vmatpush1.msra.mxu0 0.0
        %270 = vmatprep.subr.mxu0 0.0
        %271 = vmatpush1.msra.mxu0 0.0
        %272 = vmatprep.subr.mxu0 0.0
        %273 = vmatpush1.msra.mxu0 0.0
        %274 = vmatprep.subr.mxu0 0.0
        %275 = vmatpush1.msra.mxu0 0.0
        %276 = vmatprep.subr.mxu0 0.0
        %277 = vmatpush1.msra.mxu0 0.0
        %278 = vmatprep.subr.mxu0 0.0
        %279 = vmatpush1.msra.mxu0 0.0
        %280 = vmatprep.subr.mxu0 0.0
        %281 = vmatpush1.msra.mxu0 0.0
        %282 = vmatprep.subr.mxu0 0.0
        %283 = vmatpush1.msra.mxu0 0.0
        %284 = vmatprep.subr.mxu0 0.0
        %285 = vmatpush1.msra.mxu0 0.0
        %286 = vmatprep.subr.mxu0 0.0
        %287 = vmatpush1.msra.mxu0 0.0
        %288 = vmatprep.subr.mxu0 0.0
        %289 = vmatpush1.msra.mxu0 0.0
        %290 = vmatprep.subr.mxu0 0.0
        %291 = vmatpush1.msra.mxu0 0.0
        %292 = vmatprep.subr.mxu0 0.0
        %293 = vmatpush1.msra.mxu0 0.0
        %294 = vmatprep.subr.mxu0 0.0
        %295 = vmatpush1.msra.mxu0 0.0
        %296 = vmatprep.subr.mxu0 0.0
        %297 = vmatpush1.msra.mxu0 0.0
        %298 = vmatprep.subr.mxu0 0.0
        %299 = vmatpush1.msra.mxu0 0.0
        %300 = vmatprep.subr.mxu0 0.0
        %301 = vmatpush1.msra.mxu0 0.0
        %302 = vmatprep.subr.mxu0 0.0
        %303 = vmatpush1.msra.mxu0 0.0
        %304 = vmatprep.subr.mxu0 0.0
        %305 = vmatpush1.msra.mxu0 0.0
        %306 = vmatprep.subr.mxu0 0.0
        %307 = vmatpush1.msra.mxu0 0.0
        %308 = vmatprep.subr.mxu0 0.0
        %309 = vmatpush1.msra.mxu0 0.0
        %310 = vmatprep.subr.mxu0 0.0
        %311 = vmatpush1.msra.mxu0 0.0
        %312 = vmatprep.subr.mxu0 0.0
        %313 = vmatpush1.msra.mxu0 0.0
        %314 = vmatprep.subr.mxu0 0.0
        %315 = vmatpush1.msra.mxu0 0.0
        %316 = vmatprep.subr.mxu0 0.0
        %317 = vmatpush1.msra.mxu0 0.0
        %318 = vmatprep.subr.mxu0 0.0
        %319 = vmatpush1.msra.mxu0 0.0
        %320 = vmatprep.subr.mxu0 0.0
        %321 = vmatpush1.msra.mxu0 0.0
        %322 = vmatprep.subr.mxu0 0.0
        %323 = vmatpush1.msra.mxu0 0.0
        %324 = vmatprep.mubr.f32.mxu0 0.0
        %325 = vmatmul.mubr.f32.gmra.mrb[0].mxu0 %v253
        %v326 = vpop.f32.mrb[0].mxu0
        %v327 = vadd.f32 %v247, %v326
        %v328 = vpop.f32.mrb[0].mxu0
        %v329 = vadd.f32 %v247, %v328
        %330 = vdwg.mxu0
        %v331 = vxor.u32 %v327, 2147483648
        %v332 = vxor.u32 %v329, 2147483648
        %v333 = vmul.f32 %v331, 1.442695
        %v334 = vpow.pop %v333
        %v335 = vmul.f32 %v332, 1.442695
        %v336 = vpow.pop %v335
        %v337 = vadd.f32 %v334, 1.0
        %v338 = vadd.f32 %v336, 1.0
        %v339 = vrcp.pop %v337
        %v340 = vmul.f32 1.0, %v339
        %v341 = vrcp.pop %v338
        %v342 = vmul.f32 1.0, %v341
        %v343 = vmul.f32 %v327, %v340
        %v344 = vmul.f32 %v329, %v342
        %345 = vst [vmem:[#allocation2] sm:$0xf] 0.0
        %346 = vst [vmem:[#allocation2 + $0xc] sm:$0xf] 0.0
        %v349 = vcombine.low %v343, %v344
        %351 = vst [vmem:[#allocation2 + $0x4] sm:$0xff] %v349
        %v352 = vlaneseq
        %v353 = vand.u32 %v352, 127
        %v354 = vadd.s32 %v353, 128
        %vm355 = vcmp.lt.s32.totalorder %v353, 0
        %v356 = vsub.s32 0, %v353
        %v357 = vsel %vm355, %v356, %v353
        %v358 = vshrl.u32 %v357, 4
        %v359 = vand.u32 %v357, 15
        %v360 = vsub.s32 0, %v359
        %v361 = vsel %vm355, %v360, %v359
        %vm362 = vcmp.lt.s32.totalorder %v354, 0
        %v363 = vsub.s32 0, %v354
        %v364 = vsel %vm362, %v363, %v354
        %v365 = vshrl.u32 %v364, 4
        %v366 = vand.u32 %v364, 15
        %v367 = vsub.s32 0, %v366
        %v368 = vsel %vm362, %v367, %v366
        %vm369 = vcmp.ne.s32.totalorder %v361, 0
        %vm370 = vcmp.ne.s32.totalorder %v368, 0
        %vm371 = vcmp.lt.s32.totalorder %v361, 0
        %vm372 = vcmp.lt.s32.totalorder %v368, 0
        %vm373 = vmand %vm371, %vm369
        %vm374 = vmand %vm372, %vm370
        %v375 = vadd.s32 %v361, 16
        %v376 = vadd.s32 %v368, 16
        %v377 = vsel %vm373, %v375, %v361
        %v378 = vsel %vm374, %v376, %v368
        %v379 = vadd.s32 %v377, 4294967294
        %v380 = vadd.s32 %v378, 4294967294
        %vm381 = vcmp.ge.s32.totalorder %v379, 0
        %vm382 = vcmp.ge.s32.totalorder %v380, 0
        %vm383 = vcmp.lt.s32.totalorder %v379, 16
        %vm384 = vcmp.lt.s32.totalorder %v380, 16
        %vm385 = vmand %vm381, %vm383
        %vm386 = vmand %vm382, %vm384
        %v387 = vsel %vm385, 1, 0
        %v388 = vsel %vm386, 1, 0
        %v389 = vcvt.s32.f32 %v387
        %v390 = vcvt.s32.f32 %v388
        %v391 = vld [vmem:[#allocation2] sm:$0xff]
        %v392 = vld [vmem:[#allocation2 + $0x8] sm:$0xf]
        %v395 = vcombine.low %v389, %v390
        %396 = vrot.lane.b32.xlu0 %v395, 94
        %v397 = vpop.permute.xlu0 %396
        %v398 = vrot.slane %v397, 4
        %vm399 = vcmask 769024
        %v400 = vsel %vm399, %v398, %v397
        %v403 = vmul.f32 %v391, %v400
        %v404 = vmul.f32 %v392, %v398
        %v405 = vld [vmem:[%s3] sm:$0xf]
        %407 = vset.pattern.permute.xlu0 0
        %408 = vperm.xlu0 %407, %v405
        %v409 = vpop.permute.xlu0 %408
        %v411 = vunpack.c.l.s4 839922192
        %v412 = vunpack.c.0.s8 %v411
        %v413 = vlaneseq
        %v414 = vshrl.u32 %v413, 7
        %v415 = vsub.s32 %v412, %v414
        %v416 = vrot.slane %v409, %v415
        %v418 = vmul.f32 %v403, %v416
        %v419 = vmul.f32 %v404, %v416
        %v420 = vadd.f32 %v418, 0.0
        %v421 = vadd.f32 %v419, 0.0
        %v422 = vld [vmem:[#allocation2] sm:$0xff]
        %v423 = vld [vmem:[#allocation2 + $0x8] sm:$0xf]
        %424 = vrot.lane.b32.xlu0 %v395, 110
        %v425 = vpop.permute.xlu0 %424
        %v426 = vrot.slane %v425, 4
        %vm427 = vcmask 900096
        %v428 = vsel %vm427, %v426, %v425
        %v431 = vmul.f32 %v422, %v428
        %v432 = vmul.f32 %v423, %v426
        %v433 = vld [vmem:[%s3] sm:$0xf]
        %435 = vset.pattern.permute.xlu0 5
        %436 = vperm.xlu0 %435, %v433
        %v437 = vpop.permute.xlu0 %436
        %v439 = vunpack.c.l.s4 839922192
        %v440 = vunpack.c.0.s8 %v439
        %v441 = vlaneseq
        %v442 = vshrl.u32 %v441, 7
        %v443 = vsub.s32 %v440, %v442
        %v444 = vrot.slane %v437, %v443
        %v446 = vmul.f32 %v431, %v444
        %v447 = vmul.f32 %v432, %v444
        %450 = vrot.lane.b32.xlu0 %v446, 112
        %v451 = vpop.permute.xlu0 %450
        %452 = vrot.lane.b32.xlu0 %v447, 112
        %v453 = vpop.permute.xlu0 %452
        %v454 = vrot.slane %v451, 4
        %v455 = vrot.slane %v453, 4
        %v456 = vsel %vm255, %v454, %v455
        %vm457 = vcmask 916480
        %v458 = vsel %vm457, %v451, %v456
        %v461 = vadd.f32 %v420, %v458
        %v462 = vadd.f32 %v421, %v453
        %v463 = vld [vmem:[#allocation2] sm:$0xff]
        %v464 = vld [vmem:[#allocation2 + $0x8] sm:$0xf]
        %465 = vrot.lane.b32.xlu0 %v395, 126
        %v466 = vpop.permute.xlu0 %465
        %v467 = vrot.slane %v466, 4
        %vm468 = vcmask 1031168
        %v469 = vsel %vm468, %v467, %v466
        %v472 = vmul.f32 %v463, %v469
        %v473 = vmul.f32 %v464, %v467
        %v474 = vld [vmem:[%s3] sm:$0xf]
        %476 = vset.pattern.permute.xlu0 10
        %477 = vperm.xlu0 %476, %v474
        %v478 = vpop.permute.xlu0 %477
        %v480 = vunpack.c.l.s4 839922192
        %v481 = vunpack.c.0.s8 %v480
        %v482 = vlaneseq
        %v483 = vshrl.u32 %v482, 7
        %v484 = vsub.s32 %v481, %v483
        %v485 = vrot.slane %v478, %v484
        %v487 = vmul.f32 %v472, %v485
        %v488 = vmul.f32 %v473, %v485
        %491 = vrot.lane.b32.xlu0 %v487, 96
        %v492 = vpop.permute.xlu0 %491
        %493 = vrot.lane.b32.xlu0 %v488, 96
        %v494 = vpop.permute.xlu0 %493
        %v495 = vrot.slane %v492, 4
        %v496 = vrot.slane %v494, 4
        %v497 = vsel %vm255, %v495, %v496
        %vm498 = vcmask 785408
        %v499 = vsel %vm498, %v492, %v497
        %v502 = vadd.f32 %v461, %v499
        %v503 = vadd.f32 %v462, %v494
        %v504 = vld [vmem:[#allocation2 + $0x4] sm:$0xff]
        %v505 = vld [vmem:[#allocation2 + $0xc] sm:$0xf]
        %506 = vrot.lane.b32.xlu0 %v395, 14
        %v507 = vpop.permute.xlu0 %506
        %v508 = vrot.slane %v507, 4
        %vm509 = vcmask 113664
        %v510 = vsel %vm509, %v508, %v507
        %v513 = vmul.f32 %v504, %v510
        %v514 = vmul.f32 %v505, %v508
        %v515 = vld [vmem:[%s3] sm:$0xf]
        %517 = vset.pattern.permute.xlu0 15
        %518 = vperm.xlu0 %517, %v515
        %v519 = vpop.permute.xlu0 %518
        %v521 = vunpack.c.l.s4 839922192
        %v522 = vunpack.c.0.s8 %v521
        %v523 = vlaneseq
        %v524 = vshrl.u32 %v523, 7
        %v525 = vsub.s32 %v522, %v524
        %v526 = vrot.slane %v519, %v525
        %v528 = vmul.f32 %v513, %v526
        %v529 = vmul.f32 %v514, %v526
        %532 = vrot.lane.b32.xlu0 %v528, 80
        %v533 = vpop.permute.xlu0 %532
        %534 = vrot.lane.b32.xlu0 %v529, 80
        %v535 = vpop.permute.xlu0 %534
        %v536 = vrot.slane %v533, 4
        %vm537 = vcmask 654336
        %v538 = vsel %vm537, %v536, %v533
        %v539 = vsel %vm537, %v536, %v535
        %v542 = vadd.f32 %v502, %v538
        %v543 = vadd.f32 %v503, %v539
        %v544 = vld [vmem:[#allocation2 + $0x4] sm:$0xff]
        %v545 = vld [vmem:[#allocation2 + $0xc] sm:$0xf]
        %546 = vrot.lane.b32.xlu0 %v395, 30
        %v547 = vpop.permute.xlu0 %546
        %v548 = vrot.slane %v547, 4
        %vm549 = vcmask 244736
        %v550 = vsel %vm549, %v548, %v547
        %v553 = vmul.f32 %v544, %v550
        %v554 = vmul.f32 %v545, %v548
        %v555 = vld [vmem:[%s3] sm:$0xf]
        %557 = vset.pattern.permute.xlu0 20
        %558 = vperm.xlu0 %557, %v555
        %v559 = vpop.permute.xlu0 %558
        %v561 = vunpack.c.l.s4 839922192
        %v562 = vunpack.c.0.s8 %v561
        %v563 = vlaneseq
        %v564 = vshrl.u32 %v563, 7
        %v565 = vsub.s32 %v562, %v564
        %v566 = vrot.slane %v559, %v565
        %v568 = vmul.f32 %v553, %v566
        %v569 = vmul.f32 %v554, %v566
        %572 = vrot.lane.b32.xlu0 %v568, 64
        %v573 = vpop.permute.xlu0 %572
        %574 = vrot.lane.b32.xlu0 %v569, 64
        %v575 = vpop.permute.xlu0 %574
        %v576 = vrot.slane %v573, 4
        %vm577 = vcmask 523264
        %v578 = vsel %vm577, %v576, %v573
        %v579 = vsel %vm577, %v576, %v575
        %v582 = vadd.f32 %v542, %v578
        %v583 = vadd.f32 %v543, %v579
        %v584 = vadd.s32 %v377, 4294967295
        %v585 = vadd.s32 %v378, 4294967295
        %vm586 = vcmp.ge.s32.totalorder %v584, 0
        %vm587 = vcmp.ge.s32.totalorder %v585, 0
        %vm588 = vcmp.lt.s32.totalorder %v584, 16
        %vm589 = vcmp.lt.s32.totalorder %v585, 16
        %vm590 = vmand %vm586, %vm588
        %vm591 = vmand %vm587, %vm589
        %v592 = vsel %vm590, 1, 0
        %v593 = vsel %vm591, 1, 0
        %v594 = vcvt.s32.f32 %v592
        %v595 = vcvt.s32.f32 %v593
        %v596 = vld [vmem:[#allocation2] sm:$0xff]
        %v597 = vld [vmem:[#allocation2 + $0x8] sm:$0xf]
        %v600 = vcombine.low %v594, %v595
        %601 = vrot.lane.b32.xlu0 %v600, 95
        %v602 = vpop.permute.xlu0 %601
        %v603 = vrot.slane %v602, 4
        %vm604 = vcmask 777216
        %v605 = vsel %vm604, %v603, %v602
        %v608 = vmul.f32 %v596, %v605
        %v609 = vmul.f32 %v597, %v603
        %v610 = vld [vmem:[%s3] sm:$0xf]
        %612 = vset.pattern.permute.xlu0 1
        %613 = vperm.xlu0 %612, %v610
        %v614 = vpop.permute.xlu0 %613
        %v616 = vunpack.c.l.s4 839922192
        %v617 = vunpack.c.0.s8 %v616
        %v618 = vlaneseq
        %v619 = vshrl.u32 %v618, 7
        %v620 = vsub.s32 %v617, %v619
        %v621 = vrot.slane %v614, %v620
        %v623 = vmul.f32 %v608, %v621
        %v624 = vmul.f32 %v609, %v621
        %627 = vrot.lane.b32.xlu0 %v623, 127
        %v628 = vpop.permute.xlu0 %627
        %629 = vrot.lane.b32.xlu0 %v624, 127
        %v630 = vpop.permute.xlu0 %629
        %v631 = vrot.slane %v628, 4
        %v632 = vrot.slane %v630, 4
        %v633 = vsel %vm255, %v631, %v632
        %vm634 = vcmask 1039360
        %v635 = vsel %vm634, %v628, %v633
        %v638 = vadd.f32 %v582, %v635
        %v639 = vadd.f32 %v583, %v630
        %v640 = vld [vmem:[#allocation2] sm:$0xff]
        %v641 = vld [vmem:[#allocation2 + $0x8] sm:$0xf]
        %642 = vrot.lane.b32.xlu0 %v600, 111
        %v643 = vpop.permute.xlu0 %642
        %v644 = vrot.slane %v643, 4
        %vm645 = vcmask 908288
        %v646 = vsel %vm645, %v644, %v643
        %v649 = vmul.f32 %v640, %v646
        %v650 = vmul.f32 %v641, %v644
        %v651 = vld [vmem:[%s3] sm:$0xf]
        %653 = vset.pattern.permute.xlu0 6
        %654 = vperm.xlu0 %653, %v651
        %v655 = vpop.permute.xlu0 %654
        %v657 = vunpack.c.l.s4 839922192
        %v658 = vunpack.c.0.s8 %v657
        %v659 = vlaneseq
        %v660 = vshrl.u32 %v659, 7
        %v661 = vsub.s32 %v658, %v660
        %v662 = vrot.slane %v655, %v661
        %v664 = vmul.f32 %v649, %v662
        %v665 = vmul.f32 %v650, %v662
        %668 = vrot.lane.b32.xlu0 %v664, 111
        %v669 = vpop.permute.xlu0 %668
        %670 = vrot.lane.b32.xlu0 %v665, 111
        %v671 = vpop.permute.xlu0 %670
        %v672 = vrot.slane %v669, 4
        %v673 = vrot.slane %v671, 4
        %v674 = vsel %vm255, %v672, %v673
        %v675 = vsel %vm645, %v669, %v674
        %v678 = vadd.f32 %v638, %v675
        %v679 = vadd.f32 %v639, %v671
        %v680 = vld [vmem:[#allocation2] sm:$0xff]
        %v681 = vld [vmem:[#allocation2 + $0x8] sm:$0xf]
        %682 = vrot.lane.b32.xlu0 %v600, 127
        %v683 = vpop.permute.xlu0 %682
        %v684 = vrot.slane %v683, 4
        %v685 = vsel %vm634, %v684, %v683
        %v688 = vmul.f32 %v680, %v685
        %v689 = vmul.f32 %v681, %v684
        %v690 = vld [vmem:[%s3] sm:$0xf]
        %692 = vset.pattern.permute.xlu0 11
        %693 = vperm.xlu0 %692, %v690
        %v694 = vpop.permute.xlu0 %693
        %v696 = vunpack.c.l.s4 839922192
        %v697 = vunpack.c.0.s8 %v696
        %v698 = vlaneseq
        %v699 = vshrl.u32 %v698, 7
        %v700 = vsub.s32 %v697, %v699
        %v701 = vrot.slane %v694, %v700
        %v703 = vmul.f32 %v688, %v701
        %v704 = vmul.f32 %v689, %v701
        %707 = vrot.lane.b32.xlu0 %v703, 95
        %v708 = vpop.permute.xlu0 %707
        %709 = vrot.lane.b32.xlu0 %v704, 95
        %v710 = vpop.permute.xlu0 %709
        %v711 = vrot.slane %v708, 4
        %v712 = vrot.slane %v710, 4
        %v713 = vsel %vm255, %v711, %v712
        %v714 = vsel %vm604, %v708, %v713
        %v717 = vadd.f32 %v678, %v714
        %v718 = vadd.f32 %v679, %v710
        %v719 = vld [vmem:[#allocation2 + $0x4] sm:$0xff]
        %v720 = vld [vmem:[#allocation2 + $0xc] sm:$0xf]
        %721 = vrot.lane.b32.xlu0 %v600, 15
        %v722 = vpop.permute.xlu0 %721
        %v723 = vrot.slane %v722, 4
        %vm724 = vcmask 121856
        %v725 = vsel %vm724, %v723, %v722
        %v728 = vmul.f32 %v719, %v725
        %v729 = vmul.f32 %v720, %v723
        %v730 = vld [vmem:[%s3] sm:$0xf]
        %732 = vset.pattern.permute.xlu0 16
        %733 = vperm.xlu0 %732, %v730
        %v734 = vpop.permute.xlu0 %733
        %v736 = vunpack.c.l.s4 839922192
        %v737 = vunpack.c.0.s8 %v736
        %v738 = vlaneseq
        %v739 = vshrl.u32 %v738, 7
        %v740 = vsub.s32 %v737, %v739
        %v741 = vrot.slane %v734, %v740
        %v743 = vmul.f32 %v728, %v741
        %v744 = vmul.f32 %v729, %v741
        %747 = vrot.lane.b32.xlu0 %v743, 79
        %v748 = vpop.permute.xlu0 %747
        %749 = vrot.lane.b32.xlu0 %v744, 79
        %v750 = vpop.permute.xlu0 %749
        %v751 = vrot.slane %v748, 4
        %vm752 = vcmask 646144
        %v753 = vsel %vm752, %v751, %v748
        %v754 = vsel %vm752, %v751, %v750
        %v757 = vadd.f32 %v717, %v753
        %v758 = vadd.f32 %v718, %v754
        %v759 = vld [vmem:[#allocation2 + $0x4] sm:$0xff]
        %v760 = vld [vmem:[#allocation2 + $0xc] sm:$0xf]
        %761 = vrot.lane.b32.xlu0 %v600, 31
        %v762 = vpop.permute.xlu0 %761
        %v763 = vrot.slane %v762, 4
        %vm764 = vcmask 252928
        %v765 = vsel %vm764, %v763, %v762
        %v768 = vmul.f32 %v759, %v765
        %v769 = vmul.f32 %v760, %v763
        %v770 = vld [vmem:[%s3] sm:$0xf]
        %772 = vset.pattern.permute.xlu0 21
        %773 = vperm.xlu0 %772, %v770
        %v774 = vpop.permute.xlu0 %773
        %v776 = vunpack.c.l.s4 839922192
        %v777 = vunpack.c.0.s8 %v776
        %v778 = vlaneseq
        %v779 = vshrl.u32 %v778, 7
        %v780 = vsub.s32 %v777, %v779
        %v781 = vrot.slane %v774, %v780
        %v783 = vmul.f32 %v768, %v781
        %v784 = vmul.f32 %v769, %v781
        %787 = vrot.lane.b32.xlu0 %v783, 63
        %v788 = vpop.permute.xlu0 %787
        %789 = vrot.lane.b32.xlu0 %v784, 63
        %v790 = vpop.permute.xlu0 %789
        %v791 = vrot.slane %v788, 4
        %vm792 = vcmask 515072
        %v793 = vsel %vm792, %v791, %v788
        %v794 = vsel %vm792, %v791, %v790
        %v797 = vadd.f32 %v757, %v793
        %v798 = vadd.f32 %v758, %v794
        %vm799 = vcmp.ge.s32.totalorder %v377, 0
        %vm800 = vcmp.ge.s32.totalorder %v378, 0
        %vm801 = vcmp.lt.s32.totalorder %v377, 16
        %vm802 = vcmp.lt.s32.totalorder %v378, 16
        %vm803 = vmand %vm799, %vm801
        %vm804 = vmand %vm800, %vm802
        %v805 = vsel %vm803, 1, 0
        %v806 = vsel %vm804, 1, 0
        %v807 = vcvt.s32.f32 %v805
        %v808 = vcvt.s32.f32 %v806
        %v809 = vld [vmem:[#allocation2] sm:$0xff]
        %v810 = vld [vmem:[#allocation2 + $0x8] sm:$0xf]
        %v813 = vcombine.low %v807, %v808
        %814 = vrot.lane.b32.xlu0 %v813, 96
        %v815 = vpop.permute.xlu0 %814
        %v816 = vrot.slane %v815, 4
        %v817 = vsel %vm498, %v816, %v815
        %v820 = vmul.f32 %v809, %v817
        %v821 = vmul.f32 %v810, %v816
        %v822 = vld [vmem:[%s3] sm:$0xf]
        %824 = vset.pattern.permute.xlu0 2
        %825 = vperm.xlu0 %824, %v822
        %v826 = vpop.permute.xlu0 %825
        %v828 = vunpack.c.l.s4 839922192
        %v829 = vunpack.c.0.s8 %v828
        %v830 = vlaneseq
        %v831 = vshrl.u32 %v830, 7
        %v832 = vsub.s32 %v829, %v831
        %v833 = vrot.slane %v826, %v832
        %v835 = vmul.f32 %v820, %v833
        %v836 = vmul.f32 %v821, %v833
        %839 = vrot.lane.b32.xlu0 %v835, 126
        %v840 = vpop.permute.xlu0 %839
        %841 = vrot.lane.b32.xlu0 %v836, 126
        %v842 = vpop.permute.xlu0 %841
        %v843 = vrot.slane %v840, 4
        %v844 = vrot.slane %v842, 4
        %v845 = vsel %vm255, %v843, %v844
        %v846 = vsel %vm468, %v840, %v845
        %v849 = vadd.f32 %v797, %v846
        %v850 = vadd.f32 %v798, %v842
        %v851 = vld [vmem:[#allocation2] sm:$0xff]
        %v852 = vld [vmem:[#allocation2 + $0x8] sm:$0xf]
        %853 = vrot.lane.b32.xlu0 %v813, 112
        %v854 = vpop.permute.xlu0 %853
        %v855 = vrot.slane %v854, 4
        %v856 = vsel %vm457, %v855, %v854
        %v859 = vmul.f32 %v851, %v856
        %v860 = vmul.f32 %v852, %v855
        %v861 = vld [vmem:[%s3] sm:$0xf]
        %863 = vset.pattern.permute.xlu0 7
        %864 = vperm.xlu0 %863, %v861
        %v865 = vpop.permute.xlu0 %864
        %v867 = vunpack.c.l.s4 839922192
        %v868 = vunpack.c.0.s8 %v867
        %v869 = vlaneseq
        %v870 = vshrl.u32 %v869, 7
        %v871 = vsub.s32 %v868, %v870
        %v872 = vrot.slane %v865, %v871
        %v874 = vmul.f32 %v859, %v872
        %v875 = vmul.f32 %v860, %v872
        %878 = vrot.lane.b32.xlu0 %v874, 110
        %v879 = vpop.permute.xlu0 %878
        %880 = vrot.lane.b32.xlu0 %v875, 110
        %v881 = vpop.permute.xlu0 %880
        %v882 = vrot.slane %v879, 4
        %v883 = vrot.slane %v881, 4
        %v884 = vsel %vm255, %v882, %v883
        %v885 = vsel %vm427, %v879, %v884
        %v888 = vadd.f32 %v849, %v885
        %v889 = vadd.f32 %v850, %v881
        %v890 = vld [vmem:[#allocation2 + $0x4] sm:$0xff]
        %v892 = vmul.f32 %v890, %v813
        %v893 = vld [vmem:[%s3] sm:$0xf]
        %895 = vset.pattern.permute.xlu0 12
        %896 = vperm.xlu0 %895, %v893
        %v897 = vpop.permute.xlu0 %896
        %v899 = vunpack.c.l.s4 839922192
        %v900 = vunpack.c.0.s8 %v899
        %v901 = vlaneseq
        %v902 = vshrl.u32 %v901, 7
        %v903 = vsub.s32 %v900, %v902
        %v904 = vrot.slane %v897, %v903
        %v906 = vmul.f32 %v892, %v904
        %908 = vrot.lane.b32.xlu0 %v906, 94
        %v909 = vpop.permute.xlu0 %908
        %v910 = vrot.slane %v909, 4
        %v911 = vsel %vm399, %v910, %v909
        %v914 = vadd.f32 %v888, %v911
        %v915 = vadd.f32 %v889, %v910
        %v916 = vld [vmem:[#allocation2 + $0x4] sm:$0xff]
        %v917 = vld [vmem:[#allocation2 + $0xc] sm:$0xf]
        %918 = vrot.lane.b32.xlu0 %v813, 16
        %v919 = vpop.permute.xlu0 %918
        %v920 = vrot.slane %v919, 4
        %vm921 = vcmask 130048
        %v922 = vsel %vm921, %v920, %v919
        %v925 = vmul.f32 %v916, %v922
        %v926 = vmul.f32 %v917, %v920
        %v927 = vld [vmem:[%s3] sm:$0xf]
        %929 = vset.pattern.permute.xlu0 17
        %930 = vperm.xlu0 %929, %v927
        %v931 = vpop.permute.xlu0 %930
        %v933 = vunpack.c.l.s4 839922192
        %v934 = vunpack.c.0.s8 %v933
        %v935 = vlaneseq
        %v936 = vshrl.u32 %v935, 7
        %v937 = vsub.s32 %v934, %v936
        %v938 = vrot.slane %v931, %v937
        %v940 = vmul.f32 %v925, %v938
        %v941 = vmul.f32 %v926, %v938
        %944 = vrot.lane.b32.xlu0 %v940, 78
        %v945 = vpop.permute.xlu0 %944
        %946 = vrot.lane.b32.xlu0 %v941, 78
        %v947 = vpop.permute.xlu0 %946
        %v948 = vrot.slane %v945, 4
        %vm949 = vcmask 637952
        %v950 = vsel %vm949, %v948, %v945
        %v951 = vsel %vm949, %v948, %v947
        %v954 = vadd.f32 %v914, %v950
        %v955 = vadd.f32 %v915, %v951
        %v956 = vld [vmem:[#allocation2 + $0x4] sm:$0xff]
        %v957 = vld [vmem:[#allocation2 + $0xc] sm:$0xf]
        %958 = vrot.lane.b32.xlu0 %v813, 32
        %v959 = vpop.permute.xlu0 %958
        %v960 = vrot.slane %v959, 4
        %vm961 = vcmask 261120
        %v962 = vsel %vm961, %v960, %v959
        %v965 = vmul.f32 %v956, %v962
        %v966 = vmul.f32 %v957, %v960
        %v967 = vld [vmem:[%s3] sm:$0xf]
        %969 = vset.pattern.permute.xlu0 22
        %970 = vperm.xlu0 %969, %v967
        %v971 = vpop.permute.xlu0 %970
        %v973 = vunpack.c.l.s4 839922192
        %v974 = vunpack.c.0.s8 %v973
        %v975 = vlaneseq
        %v976 = vshrl.u32 %v975, 7
        %v977 = vsub.s32 %v974, %v976
        %v978 = vrot.slane %v971, %v977
        %v980 = vmul.f32 %v965, %v978
        %v981 = vmul.f32 %v966, %v978
        %984 = vrot.lane.b32.xlu0 %v980, 62
        %v985 = vpop.permute.xlu0 %984
        %986 = vrot.lane.b32.xlu0 %v981, 62
        %v987 = vpop.permute.xlu0 %986
        %v988 = vrot.slane %v985, 4
        %vm989 = vcmask 506880
        %v990 = vsel %vm989, %v988, %v985
        %v991 = vsel %vm989, %v988, %v987
        %v994 = vadd.f32 %v954, %v990
        %v995 = vadd.f32 %v955, %v991
        %v996 = vadd.s32 %v377, 1
        %v997 = vadd.s32 %v378, 1
        %vm998 = vcmp.ge.s32.totalorder %v996, 0
        %vm999 = vcmp.ge.s32.totalorder %v997, 0
        %vm1000 = vcmp.lt.s32.totalorder %v996, 16
        %vm1001 = vcmp.lt.s32.totalorder %v997, 16
        %vm1002 = vmand %vm998, %vm1000
        %vm1003 = vmand %vm999, %vm1001
        %v1004 = vsel %vm1002, 1, 0
        %v1005 = vsel %vm1003, 1, 0
        %v1006 = vcvt.s32.f32 %v1004
        %v1007 = vcvt.s32.f32 %v1005
        %v1008 = vld [vmem:[#allocation2] sm:$0xff]
        %v1009 = vld [vmem:[#allocation2 + $0x8] sm:$0xf]
        %v1012 = vcombine.low %v1006, %v1007
        %1013 = vrot.lane.b32.xlu0 %v1012, 97
        %v1014 = vpop.permute.xlu0 %1013
        %v1015 = vrot.slane %v1014, 4
        %vm1016 = vcmask 793600
        %v1017 = vsel %vm1016, %v1015, %v1014
        %v1020 = vmul.f32 %v1008, %v1017
        %v1021 = vmul.f32 %v1009, %v1015
        %v1022 = vld [vmem:[%s3] sm:$0xf]
        %1024 = vset.pattern.permute.xlu0 3
        %1025 = vperm.xlu0 %1024, %v1022
        %v1026 = vpop.permute.xlu0 %1025
        %v1028 = vunpack.c.l.s4 839922192
        %v1029 = vunpack.c.0.s8 %v1028
        %v1030 = vlaneseq
        %v1031 = vshrl.u32 %v1030, 7
        %v1032 = vsub.s32 %v1029, %v1031
        %v1033 = vrot.slane %v1026, %v1032
        %v1035 = vmul.f32 %v1020, %v1033
        %v1036 = vmul.f32 %v1021, %v1033
        %1039 = vrot.lane.b32.xlu0 %v1035, 125
        %v1040 = vpop.permute.xlu0 %1039
        %1041 = vrot.lane.b32.xlu0 %v1036, 125
        %v1042 = vpop.permute.xlu0 %1041
        %v1043 = vrot.slane %v1040, 4
        %v1044 = vrot.slane %v1042, 4
        %v1045 = vsel %vm255, %v1043, %v1044
        %vm1046 = vcmask 1022976
        %v1047 = vsel %vm1046, %v1040, %v1045
        %v1050 = vadd.f32 %v994, %v1047
        %v1051 = vadd.f32 %v995, %v1042
        %v1052 = vld [vmem:[#allocation2] sm:$0xff]
        %v1053 = vld [vmem:[#allocation2 + $0x8] sm:$0xf]
        %1054 = vrot.lane.b32.xlu0 %v1012, 113
        %v1055 = vpop.permute.xlu0 %1054
        %v1056 = vrot.slane %v1055, 4
        %vm1057 = vcmask 924672
        %v1058 = vsel %vm1057, %v1056, %v1055
        %v1061 = vmul.f32 %v1052, %v1058
        %v1062 = vmul.f32 %v1053, %v1056
        %v1063 = vld [vmem:[%s3] sm:$0xf]
        %1065 = vset.pattern.permute.xlu0 8
        %1066 = vperm.xlu0 %1065, %v1063
        %v1067 = vpop.permute.xlu0 %1066
        %v1069 = vunpack.c.l.s4 839922192
        %v1070 = vunpack.c.0.s8 %v1069
        %v1071 = vlaneseq
        %v1072 = vshrl.u32 %v1071, 7
        %v1073 = vsub.s32 %v1070, %v1072
        %v1074 = vrot.slane %v1067, %v1073
        %v1076 = vmul.f32 %v1061, %v1074
        %v1077 = vmul.f32 %v1062, %v1074
        %1080 = vrot.lane.b32.xlu0 %v1076, 109
        %v1081 = vpop.permute.xlu0 %1080
        %1082 = vrot.lane.b32.xlu0 %v1077, 109
        %v1083 = vpop.permute.xlu0 %1082
        %v1084 = vrot.slane %v1081, 4
        %v1085 = vrot.slane %v1083, 4
        %v1086 = vsel %vm255, %v1084, %v1085
        %vm1087 = vcmask 891904
        %v1088 = vsel %vm1087, %v1081, %v1086
        %v1091 = vadd.f32 %v1050, %v1088
        %v1092 = vadd.f32 %v1051, %v1083
        %v1093 = vld [vmem:[#allocation2 + $0x4] sm:$0xff]
        %v1094 = vld [vmem:[#allocation2 + $0xc] sm:$0xf]
        %1095 = vrot.lane.b32.xlu0 %v1012, 1
        %v1096 = vpop.permute.xlu0 %1095
        %v1097 = vrot.slane %v1096, 4
        %vm1098 = vcmask 7168
        %v1099 = vsel %vm1098, %v1097, %v1096
        %v1102 = vmul.f32 %v1093, %v1099
        %v1103 = vmul.f32 %v1094, %v1097
        %v1104 = vld [vmem:[%s3] sm:$0xf]
        %1106 = vset.pattern.permute.xlu0 13
        %1107 = vperm.xlu0 %1106, %v1104
        %v1108 = vpop.permute.xlu0 %1107
        %v1110 = vunpack.c.l.s4 839922192
        %v1111 = vunpack.c.0.s8 %v1110
        %v1112 = vlaneseq
        %v1113 = vshrl.u32 %v1112, 7
        %v1114 = vsub.s32 %v1111, %v1113
        %v1115 = vrot.slane %v1108, %v1114
        %v1117 = vmul.f32 %v1102, %v1115
        %v1118 = vmul.f32 %v1103, %v1115
        %1121 = vrot.lane.b32.xlu0 %v1117, 93
        %v1122 = vpop.permute.xlu0 %1121
        %1123 = vrot.lane.b32.xlu0 %v1118, 93
        %v1124 = vpop.permute.xlu0 %1123
        %v1125 = vrot.slane %v1122, 4
        %vm1126 = vcmask 760832
        %v1127 = vsel %vm1126, %v1125, %v1122
        %v1128 = vsel %vm1126, %v1125, %v1124
        %v1131 = vadd.f32 %v1091, %v1127
        %v1132 = vadd.f32 %v1092, %v1128
        %v1133 = vld [vmem:[#allocation2 + $0x4] sm:$0xff]
        %v1134 = vld [vmem:[#allocation2 + $0xc] sm:$0xf]
        %1135 = vrot.lane.b32.xlu0 %v1012, 17
        %v1136 = vpop.permute.xlu0 %1135
        %v1137 = vrot.slane %v1136, 4
        %vm1138 = vcmask 138240
        %v1139 = vsel %vm1138, %v1137, %v1136
        %v1142 = vmul.f32 %v1133, %v1139
        %v1143 = vmul.f32 %v1134, %v1137
        %v1144 = vld [vmem:[%s3] sm:$0xf]
        %1146 = vset.pattern.permute.xlu0 18
        %1147 = vperm.xlu0 %1146, %v1144
        %v1148 = vpop.permute.xlu0 %1147
        %v1150 = vunpack.c.l.s4 839922192
        %v1151 = vunpack.c.0.s8 %v1150
        %v1152 = vlaneseq
        %v1153 = vshrl.u32 %v1152, 7
        %v1154 = vsub.s32 %v1151, %v1153
        %v1155 = vrot.slane %v1148, %v1154
        %v1157 = vmul.f32 %v1142, %v1155
        %v1158 = vmul.f32 %v1143, %v1155
        %1161 = vrot.lane.b32.xlu0 %v1157, 77
        %v1162 = vpop.permute.xlu0 %1161
        %1163 = vrot.lane.b32.xlu0 %v1158, 77
        %v1164 = vpop.permute.xlu0 %1163
        %v1165 = vrot.slane %v1162, 4
        %vm1166 = vcmask 629760
        %v1167 = vsel %vm1166, %v1165, %v1162
        %v1168 = vsel %vm1166, %v1165, %v1164
        %v1171 = vadd.f32 %v1131, %v1167
        %v1172 = vadd.f32 %v1132, %v1168
        %v1173 = vld [vmem:[#allocation2 + $0x4] sm:$0xff]
        %v1174 = vld [vmem:[#allocation2 + $0xc] sm:$0xf]
        %1175 = vrot.lane.b32.xlu0 %v1012, 33
        %v1176 = vpop.permute.xlu0 %1175
        %v1177 = vrot.slane %v1176, 4
        %vm1178 = vcmask 269312
        %v1179 = vsel %vm1178, %v1177, %v1176
        %v1182 = vmul.f32 %v1173, %v1179
        %v1183 = vmul.f32 %v1174, %v1177
        %v1184 = vld [vmem:[%s3] sm:$0xf]
        %1186 = vset.pattern.permute.xlu0 23
        %1187 = vperm.xlu0 %1186, %v1184
        %v1188 = vpop.permute.xlu0 %1187
        %v1190 = vunpack.c.l.s4 839922192
        %v1191 = vunpack.c.0.s8 %v1190
        %v1192 = vlaneseq
        %v1193 = vshrl.u32 %v1192, 7
        %v1194 = vsub.s32 %v1191, %v1193
        %v1195 = vrot.slane %v1188, %v1194
        %v1197 = vmul.f32 %v1182, %v1195
        %v1198 = vmul.f32 %v1183, %v1195
        %1201 = vrot.lane.b32.xlu0 %v1197, 61
        %v1202 = vpop.permute.xlu0 %1201
        %1203 = vrot.lane.b32.xlu0 %v1198, 61
        %v1204 = vpop.permute.xlu0 %1203
        %v1205 = vrot.slane %v1202, 4
        %vm1206 = vcmask 498688
        %v1207 = vsel %vm1206, %v1205, %v1202
        %v1208 = vsel %vm1206, %v1205, %v1204
        %v1211 = vadd.f32 %v1171, %v1207
        %v1212 = vadd.f32 %v1172, %v1208
        %v1213 = vadd.s32 %v377, 2
        %v1214 = vadd.s32 %v378, 2
        %vm1215 = vcmp.ge.s32.totalorder %v1213, 0
        %vm1216 = vcmp.ge.s32.totalorder %v1214, 0
        %vm1217 = vcmp.lt.s32.totalorder %v1213, 16
        %vm1218 = vcmp.lt.s32.totalorder %v1214, 16
        %vm1219 = vmand %vm1215, %vm1217
        %vm1220 = vmand %vm1216, %vm1218
        %v1221 = vsel %vm1219, 1, 0
        %v1222 = vsel %vm1220, 1, 0
        %v1223 = vcvt.s32.f32 %v1221
        %v1224 = vcvt.s32.f32 %v1222
        %v1225 = vld [vmem:[#allocation2] sm:$0xff]
        %v1226 = vld [vmem:[#allocation2 + $0x8] sm:$0xf]
        %v1229 = vcombine.low %v1223, %v1224
        %1230 = vrot.lane.b32.xlu0 %v1229, 98
        %v1231 = vpop.permute.xlu0 %1230
        %v1232 = vrot.slane %v1231, 4
        %vm1233 = vcmask 801792
        %v1234 = vsel %vm1233, %v1232, %v1231
        %v1237 = vmul.f32 %v1225, %v1234
        %v1238 = vmul.f32 %v1226, %v1232
        %v1239 = vld [vmem:[%s3] sm:$0xf]
        %1241 = vset.pattern.permute.xlu0 4
        %1242 = vperm.xlu0 %1241, %v1239
        %v1243 = vpop.permute.xlu0 %1242
        %v1245 = vunpack.c.l.s4 839922192
        %v1246 = vunpack.c.0.s8 %v1245
        %v1247 = vlaneseq
        %v1248 = vshrl.u32 %v1247, 7
        %v1249 = vsub.s32 %v1246, %v1248
        %v1250 = vrot.slane %v1243, %v1249
        %v1252 = vmul.f32 %v1237, %v1250
        %v1253 = vmul.f32 %v1238, %v1250
        %1256 = vrot.lane.b32.xlu0 %v1252, 124
        %v1257 = vpop.permute.xlu0 %1256
        %1258 = vrot.lane.b32.xlu0 %v1253, 124
        %v1259 = vpop.permute.xlu0 %1258
        %v1260 = vrot.slane %v1257, 4
        %v1261 = vrot.slane %v1259, 4
        %v1262 = vsel %vm255, %v1260, %v1261
        %vm1263 = vcmask 1014784
        %v1264 = vsel %vm1263, %v1257, %v1262
        %v1267 = vadd.f32 %v1211, %v1264
        %v1268 = vadd.f32 %v1212, %v1259
        %v1269 = vld [vmem:[#allocation2] sm:$0xff]
        %v1270 = vld [vmem:[#allocation2 + $0x8] sm:$0xf]
        %1271 = vrot.lane.b32.xlu0 %v1229, 114
        %v1272 = vpop.permute.xlu0 %1271
        %v1273 = vrot.slane %v1272, 4
        %vm1274 = vcmask 932864
        %v1275 = vsel %vm1274, %v1273, %v1272
        %v1278 = vmul.f32 %v1269, %v1275
        %v1279 = vmul.f32 %v1270, %v1273
        %v1280 = vld [vmem:[%s3] sm:$0xf]
        %1282 = vset.pattern.permute.xlu0 9
        %1283 = vperm.xlu0 %1282, %v1280
        %v1284 = vpop.permute.xlu0 %1283
        %v1286 = vunpack.c.l.s4 839922192
        %v1287 = vunpack.c.0.s8 %v1286
        %v1288 = vlaneseq
        %v1289 = vshrl.u32 %v1288, 7
        %v1290 = vsub.s32 %v1287, %v1289
        %v1291 = vrot.slane %v1284, %v1290
        %v1293 = vmul.f32 %v1278, %v1291
        %v1294 = vmul.f32 %v1279, %v1291
        %1297 = vrot.lane.b32.xlu0 %v1293, 108
        %v1298 = vpop.permute.xlu0 %1297
        %1299 = vrot.lane.b32.xlu0 %v1294, 108
        %v1300 = vpop.permute.xlu0 %1299
        %v1301 = vrot.slane %v1298, 4
        %v1302 = vrot.slane %v1300, 4
        %v1303 = vsel %vm255, %v1301, %v1302
        %vm1304 = vcmask 883712
        %v1305 = vsel %vm1304, %v1298, %v1303
        %v1308 = vadd.f32 %v1267, %v1305
        %v1309 = vadd.f32 %v1268, %v1300
        %v1310 = vld [vmem:[#allocation2 + $0x4] sm:$0xff]
        %v1311 = vld [vmem:[#allocation2 + $0xc] sm:$0xf]
        %1312 = vrot.lane.b32.xlu0 %v1229, 2
        %v1313 = vpop.permute.xlu0 %1312
        %v1314 = vrot.slane %v1313, 4
        %vm1315 = vcmask 15360
        %v1316 = vsel %vm1315, %v1314, %v1313
        %v1319 = vmul.f32 %v1310, %v1316
        %v1320 = vmul.f32 %v1311, %v1314
        %v1321 = vld [vmem:[%s3] sm:$0xf]
        %1323 = vset.pattern.permute.xlu0 14
        %1324 = vperm.xlu0 %1323, %v1321
        %v1325 = vpop.permute.xlu0 %1324
        %v1327 = vunpack.c.l.s4 839922192
        %v1328 = vunpack.c.0.s8 %v1327
        %v1329 = vlaneseq
        %v1330 = vshrl.u32 %v1329, 7
        %v1331 = vsub.s32 %v1328, %v1330
        %v1332 = vrot.slane %v1325, %v1331
        %v1334 = vmul.f32 %v1319, %v1332
        %v1335 = vmul.f32 %v1320, %v1332
        %1338 = vrot.lane.b32.xlu0 %v1334, 92
        %v1339 = vpop.permute.xlu0 %1338
        %1340 = vrot.lane.b32.xlu0 %v1335, 92
        %v1341 = vpop.permute.xlu0 %1340
        %v1342 = vrot.slane %v1339, 4
        %vm1343 = vcmask 752640
        %v1344 = vsel %vm1343, %v1342, %v1339
        %v1345 = vsel %vm1343, %v1342, %v1341
        %v1348 = vadd.f32 %v1308, %v1344
        %v1349 = vadd.f32 %v1309, %v1345
        %v1350 = vld [vmem:[#allocation2 + $0x4] sm:$0xff]
        %v1351 = vld [vmem:[#allocation2 + $0xc] sm:$0xf]
        %1352 = vrot.lane.b32.xlu0 %v1229, 18
        %v1353 = vpop.permute.xlu0 %1352
        %v1354 = vrot.slane %v1353, 4
        %vm1355 = vcmask 146432
        %v1356 = vsel %vm1355, %v1354, %v1353
        %v1359 = vmul.f32 %v1350, %v1356
        %v1360 = vmul.f32 %v1351, %v1354
        %v1361 = vld [vmem:[%s3] sm:$0xf]
        %1363 = vset.pattern.permute.xlu0 19
        %1364 = vperm.xlu0 %1363, %v1361
        %v1365 = vpop.permute.xlu0 %1364
        %v1367 = vunpack.c.l.s4 839922192
        %v1368 = vunpack.c.0.s8 %v1367
        %v1369 = vlaneseq
        %v1370 = vshrl.u32 %v1369, 7
        %v1371 = vsub.s32 %v1368, %v1370
        %v1372 = vrot.slane %v1365, %v1371
        %v1374 = vmul.f32 %v1359, %v1372
        %v1375 = vmul.f32 %v1360, %v1372
        %1378 = vrot.lane.b32.xlu0 %v1374, 76
        %v1379 = vpop.permute.xlu0 %1378
        %1380 = vrot.lane.b32.xlu0 %v1375, 76
        %v1381 = vpop.permute.xlu0 %1380
        %v1382 = vrot.slane %v1379, 4
        %vm1383 = vcmask 621568
        %v1384 = vsel %vm1383, %v1382, %v1379
        %v1385 = vsel %vm1383, %v1382, %v1381
        %v1388 = vadd.f32 %v1348, %v1384
        %v1389 = vadd.f32 %v1349, %v1385
        %v1390 = vld [vmem:[#allocation2 + $0x4] sm:$0xff]
        %v1391 = vld [vmem:[#allocation2 + $0xc] sm:$0xf]
        %1392 = vrot.lane.b32.xlu0 %v1229, 34
        %v1393 = vpop.permute.xlu0 %1392
        %v1394 = vrot.slane %v1393, 4
        %vm1395 = vcmask 277504
        %v1396 = vsel %vm1395, %v1394, %v1393
        %v1399 = vmul.f32 %v1390, %v1396
        %v1400 = vmul.f32 %v1391, %v1394
        %v1401 = vld [vmem:[%s3] sm:$0xf]
        %1403 = vset.pattern.permute.xlu0 24
        %1404 = vperm.xlu0 %1403, %v1401
        %v1405 = vpop.permute.xlu0 %1404
        %v1407 = vunpack.c.l.s4 839922192
        %v1408 = vunpack.c.0.s8 %v1407
        %v1409 = vlaneseq
        %v1410 = vshrl.u32 %v1409, 7
        %v1411 = vsub.s32 %v1408, %v1410
        %v1412 = vrot.slane %v1405, %v1411
        %v1414 = vmul.f32 %v1399, %v1412
        %v1415 = vmul.f32 %v1400, %v1412
        %1418 = vrot.lane.b32.xlu0 %v1414, 60
        %v1419 = vpop.permute.xlu0 %1418
        %1420 = vrot.lane.b32.xlu0 %v1415, 60
        %v1421 = vpop.permute.xlu0 %1420
        %v1422 = vrot.slane %v1419, 4
        %vm1423 = vcmask 490496
        %v1424 = vsel %vm1423, %v1422, %v1419
        %v1425 = vsel %vm1423, %v1422, %v1421
        %v1428 = vadd.f32 %v1388, %v1424
        %v1429 = vadd.f32 %v1389, %v1425
        %v1430 = vld [vmem:[%s4] sm:$0xf]
        %1432 = vset.pattern.permute.xlu0 0
        %1433 = vperm.xlu0 %1432, %v1430
        %v1434 = vpop.permute.xlu0 %1433
        %v1436 = vunpack.c.l.s4 839922192
        %v1437 = vunpack.c.0.s8 %v1436
        %v1438 = vlaneseq
        %v1439 = vshrl.u32 %v1438, 7
        %v1440 = vsub.s32 %v1437, %v1439
        %v1441 = vrot.slane %v1434, %v1440
        %v1443 = vadd.f32 %v1428, %v1441
        %v1444 = vadd.f32 %v1429, %v1441
        %v1445 = vxor.u32 %v1443, 2147483648
        %v1446 = vxor.u32 %v1444, 2147483648
        %v1447 = vmul.f32 %v1445, 1.442695
        %v1448 = vpow.pop %v1447
        %v1449 = vmul.f32 %v1446, 1.442695
        %v1450 = vpow.pop %v1449
        %v1451 = vadd.f32 %v1448, 1.0
        %v1452 = vadd.f32 %v1450, 1.0
        %v1453 = vrcp.pop %v1451
        %v1454 = vmul.f32 1.0, %v1453
        %v1455 = vrcp.pop %v1452
        %v1456 = vmul.f32 1.0, %v1455
        %v1457 = vmul.f32 %v1443, %v1454
        %v1458 = vmul.f32 %v1444, %v1456
        %1459 = vst [vmem:[%s240] sm:$0x3] %v343
        %1460 = vst [vmem:[%s240 + $0x8] sm:$0x3] %v344
        %v1461 = vrot.slane %v343, 6
        %v1462 = vrot.slane %v344, 6
        %1465 = vst [vmem:[%s240] sm:$0x30] %v1461
        %1466 = vst [vmem:[%s240 + $0x8] sm:$0x30] %v1462
        %v1469 = vcombine.high %v1457, %v1457
        %v1470 = vrot.slane %v1457, 6
        %v1471 = vrot.slane %v1469, 6
        %v1472 = vrot.slane %v1458, 6
        %1473 = vrot.lane.b32.xlu0 %v1470, 34
        %v1474 = vpop.permute.xlu0 %1473
        %1475 = vrot.lane.b32.xlu0 %v1471, 34
        %v1476 = vpop.permute.xlu0 %1475
        %1477 = vrot.lane.b32.xlu0 %v1472, 34
        %v1478 = vpop.permute.xlu0 %1477
        %v1479 = vsel %vm1395, %v1474, %v1476
        %v1480 = vsel %vm1395, %v1476, %v1478
        %1483 = vst [vmem:[%s240] sm:$0xc] %v1479
        %1484 = vst [vmem:[%s240 + $0x8] sm:$0xc] %v1480
        %v1485 = vcombine.low %v1457, %v1457
        %v1486 = vcombine.low %v1458, %v1458
        %1487 = vrot.lane.b32.xlu0 %v1485, 34
        %v1488 = vpop.permute.xlu0 %1487
        %1489 = vrot.lane.b32.xlu0 %v1457, 34
        %v1490 = vpop.permute.xlu0 %1489
        %1491 = vrot.lane.b32.xlu0 %v1486, 34
        %v1492 = vpop.permute.xlu0 %1491
        %v1493 = vsel %vm1395, %v1488, %v1490
        %v1494 = vsel %vm1395, %v1490, %v1492
        %1497 = vst [vmem:[%s240] sm:$0xc0] %v1493
        %1498 = vst [vmem:[%s240 + $0x8] sm:$0xc0] %v1494
        %s1499 = sand.u32 %s140, 1
        %s1500 = scalar_lea.sflag [#allocation5], %s1499
        %s1501 = sand.u32 %s140, 1
        %s1502 = smul.addr %s1501, 16
        %s1503 = scalar_lea.vmem [#allocation6], %s1502
        // Predicated region
        $region45: #{tpu_custom_call.1} parent=39 // pred_check
          %p1504 = pneg %p150
        $region46: #{tpu_custom_call.1} parent=39 // pred_check_branch
          %1506 = sbr.rel (%p1504) target = $region48
        $region47: #{tpu_custom_call.1} parent=39 // pred_region
          %s1508 = ssub.s32 256, 256
          %1509 = vsyncadd %s1500, %s1508
          %s1510 = smul.addr %s22, 2
          %s1511 = smul.addr %s1510, 128
          %s1512 = scalar_lea.hbm %s5, %s1511
          %s1514 = sshll.u32 %s1503, 4
          %s1515 = int_to_ptr.vmem [resolvable:$true] %s1514
          %1517 = dma.vmem_to_hbm [thread:$0]  %s1515, 256, %s1512, %s1500
        $region48: #{tpu_custom_call.1} parent=39 // pred_fallthru
          _
      $region40: #{tpu_custom_call.1} parent=5 // pred_fallthru
        _
      %p1518 = scmp.le.s32.totalorder 2, %s17
      // Predicated region
      $region49: #{tpu_custom_call.1} parent=5 // pred_check
        %p1519 = pneg %p1518
      $region50: #{tpu_custom_call.1} parent=5 // pred_check_branch
        %1521 = sbr.rel (%p1519) target = $region52
      $region51: #{tpu_custom_call.1} parent=5 // pred_region
        %s1522 = ssub.s32 %s17, 2
        // Predicated region
        $region53: #{tpu_custom_call.1} parent=51 // pred_check
          %p1523 = pneg %p156
        $region54: #{tpu_custom_call.1} parent=51 // pred_check_branch
          %1525 = sbr.rel (%p1523) target = $region56
        $region55: #{tpu_custom_call.1} parent=51 // pred_region
          %s1526 = sand.u32 %s141, 1
          %s1527 = scalar_lea.sflag [#allocation5], %s1526
          %s1528 = sand.u32 %s141, 1
          %s1529 = smul.addr %s1528, 16
          %s1530 = scalar_lea.vmem [#allocation6], %s1529
          %1531 = dma.done %s1527, 256
        $region56: #{tpu_custom_call.1} parent=51 // pred_fallthru
          _
      $region52: #{tpu_custom_call.1} parent=5 // pred_fallthru
        _
    $region6: #{tpu_custom_call.1} parent=1 // loop_footer
      %s21 = sadd.s32 1, %s17
    $region7: #{tpu_custom_call.1} parent=1 // loop_footer_branch
      %16 = sbr.rel target = $region3
    $region8: #{tpu_custom_call.1} parent=1 // loop_exit
      _
    %1532 = vsyncpa [#allocation4], 1
    %s1533 = scalar_lea.sflag [#allocation4], 1
    %1534 = vsyncpa %s1533, 1
    %1535 = vsyncpa [#allocation5], 1
    %s1536 = scalar_lea.sflag [#allocation5], 1
    %1537 = vsyncpa %s1536, 1

</llo_original>
